<compile_context>
chip_gen: v7x
topology: tpu7x:2x2x1
jax: 0.10.0
libtpu: 0.0.40
codegen_flags: <defaults>
</compile_context>

<pallas_src>
import functools

import jax
import jax.numpy as jnp
from jax.experimental import pallas as pl
from jax.experimental.pallas import tpu as pltpu


# ------------------------------ shared chain -------------------------------- #
def _decomp_chain_and_store(res, t_idx, *, axis, step, rep_fn, kernel_sizes,
                            direct_max, out_refs):
    """Runs the chained decomposition on `res` (f32) and stores means + residual.

    res     : f32 array; time runs along `axis` with a stride of `step` elements per
              time step (native path: step=1 on sublanes; flat path: step=C on lanes).
    t_idx   : int32 array broadcastable against `res`, holding the time index of every
              element along `axis`.
    rep_fn  : rep_fn(arr, t) -> arr with the time-slice `t` replicated along time.
    """
    mean_refs, res_ref = out_refs[:-1], out_refs[-1]
    dim = res.shape[axis]
    L = dim // step

    for ks, m_ref in zip(kernel_sizes, mean_refs):
        pad = ks // 2
        left, right = (pad - 1, pad) if ks % 2 == 0 else (pad, pad)
        use_prefix = ks > direct_max

        # Edge values replicated along time — hoisted out of the per-shift loop
        # (JAX does not CSE broadcast_in_dim, so doing this once per ks matters).
        first_b = rep_fn(res, 0) if (left > 0 or use_prefix) else None
        last_b = rep_fn(res, L - 1) if right > 0 else None

        if not use_prefix:
            # ---- direct path: (ks-1) rolls + masked selects, acc seeded with res ----
            acc = res
            for d in range(-left, right + 1):           # term_d[t] = res[clamp(t+d)]
                if d == 0:
                    continue
                shifted = pltpu.roll(res, shift=(-d * step) % dim, axis=axis)
                if d > 0:
                    term = jnp.where(t_idx <= L - 1 - d, shifted, last_b)
                else:
                    term = jnp.where(t_idx >= -d, shifted, first_b)
                acc = acc + term
            mean_f32 = acc * (1.0 / ks)
        else:
            # ---- prefix-sum path: O(log L) rolls, centred on the first time step ----
            base = first_b
            p = res - base                               # q[0] == 0 exactly
            s = 1
            while s < L:                                 # inclusive cumsum along time
                p = p + jnp.where(t_idx >= s,
                                  pltpu.roll(p, shift=s * step, axis=axis), 0.0)
                s *= 2
            if right > 0:
                p_last = rep_fn(p, L - 1)
                p_hi = jnp.where(t_idx <= L - 1 - right,
                                 pltpu.roll(p, shift=(-right * step) % dim, axis=axis),
                                 p_last)                 # P_q[min(t+right, L-1)]
            else:
                p_hi = p
            p_lo = jnp.where(t_idx >= left + 1,
                             pltpu.roll(p, shift=((left + 1) * step) % dim, axis=axis),
                             0.0)                        # P_q[t-left-1] (0 below)
            acc = p_hi - p_lo
            # Left-edge correction vanishes after centring (q[0] == 0).  Right-edge
            # overhang contributes (count) * (last - first).
            if right > 0:
                n_right = jnp.maximum(t_idx - (L - 1 - right), 0).astype(jnp.float32)
                acc = acc + n_right * (last_b - base)
            mean_f32 = acc * (1.0 / ks) + base

        mean = mean_f32.astype(m_ref.dtype)
        m_ref[...] = mean
        # Subtract the stored (rounded) mean so res matches PyTorch `res = res - mean`.
        res = res - mean.astype(jnp.float32)

    res_ref[...] = res.astype(res_ref.dtype)


# --------------------------------- kernels ---------------------------------- #
def _decomp_native_kernel(x_ref, *out_refs, kernel_sizes, direct_max):
    """Path A (C >= 128): native (bt, L, ct) block, time on sublanes, channels on lanes."""
    res = x_ref[...].astype(jnp.float32)                 # (bt, L, ct)
    L = res.shape[1]
    t_idx = jax.lax.broadcasted_iota(jnp.int32, (1, L, 1), 1)

    def rep(arr, t):                                     # replicate time-slice t along L
        return jnp.broadcast_to(jax.lax.slice_in_dim(arr, t, t + 1, axis=1), arr.shape)

    _decomp_chain_and_store(res, t_idx, axis=1, step=1, rep_fn=rep,
                            kernel_sizes=kernel_sizes, direct_max=direct_max,
                            out_refs=out_refs)


def _decomp_flat_kernel(t_ref, x_ref, *out_refs, kernel_sizes, n_chan, direct_max):
    """Path B (C < 128): (bt, L*C) block, time on the lane axis with stride C."""
    res = x_ref[...].astype(jnp.float32)                 # (bt, W) with W = L*C
    W = res.shape[1]
    C = n_chan
    t_idx = t_ref[...]                                   # (1, W) int32, DMA'd once
    lane = jax.lax.broadcasted_iota(jnp.int32, (1, W), 1)

    def rep(arr, t):
        # Replicate the C-wide lane group at time `t` to every time step via
        # ceil(log2(L)) masked roll-doubling steps (pure XLU work, no relayouts).
        in_group = jnp.logical_and(lane >= t * C, lane < (t + 1) * C)
        z = jnp.where(in_group, arr, 0.0)
        s = C
        if t == 0:                                       # spread toward higher lanes
            while s < W:
                z = z + jnp.where(lane >= s, pltpu.roll(z, shift=s, axis=1), 0.0)
                s *= 2
        else:                                            # t == L-1: spread toward lower lanes
            while s < W:
                z = z + jnp.where(lane < W - s,
                                  pltpu.roll(z, shift=(W - s) % W, axis=1), 0.0)
                s *= 2
        return z

    _decomp_chain_and_store(res, t_idx, axis=1, step=C, rep_fn=rep,
                            kernel_sizes=kernel_sizes, direct_max=direct_max,
                            out_refs=out_refs)


# ------------------------------ tiling helpers ------------------------------ #
def _pad_to(v, m):
    return -(-v // m) * m


def _vmem_capacity_bytes():
    try:
        cap = getattr(pltpu.get_tpu_info(), "vmem_capacity_bytes", None)
        if cap:
            return int(cap)
    except Exception:
        pass
    return 64 * 2**20            # v7x has the smallest per-core VMEM; safe default.


def _divisors_desc(n):
    return [d for d in range(n, 0, -1) if n % d == 0]


def _est_native(bt, ct, L, n_out, itemsize):
    blk = bt * _pad_to(L, 8) * _pad_to(ct, 128)
    return (n_out + 1) * 2 * blk * itemsize + 10 * blk * 4


def _est_flat(bt, W, n_out, itemsize):
    blk = _pad_to(bt, 8) * _pad_to(W, 128)
    return (n_out + 1) * 2 * blk * itemsize + 10 * blk * 4 + 2 * _pad_to(W, 128) * 4


def _choose_native_block(B, L, C, n_out, itemsize, budget):
    if C % 128 == 0:
        cts = sorted({c for c in (128, 256, 512, 1024, 2048, C)
                      if c <= C and C % c == 0}, reverse=True)
    else:
        cts = [C]
    bts = _divisors_desc(B)
    fits = [(bt, ct) for ct in cts for bt in bts
            if _est_native(bt, ct, L, n_out, itemsize) <= budget]
    if not fits:
        # TODO(synk): halo L-tiling for sequences too long even for a (1, L, 128) block.
        return 1, cts[-1]
    multi = [p for p in fits if (B // p[0]) * (C // p[1]) >= 2]
    pool = multi if multi else fits      # prefer >=2 grid steps (v7x dual TensorCore)
    return max(pool, key=lambda p: p[0] * p[1])


def _choose_flat_block(B, W, n_out, itemsize, budget):
    # Second-minor block dim must be a multiple of 8 or equal to the full dim B.
    bts = [b for b in _divisors_desc(B) if b % 8 == 0 or b == B]
    fits = [b for b in bts if _est_flat(b, W, n_out, itemsize) <= budget]
    if not fits:
        # TODO(synk): halo L-tiling for very long L*C rows.
        return min(bts)
    multi = [b for b in fits if B // b >= 2]
    return max(multi) if multi else max(fits)


def _vmem_limit_bytes(est, cap):
    return int(min(max(est * 1.4, 32 * 2**20), cap * 0.88))


# --------------------------------- wrapper ---------------------------------- #
def series_decomp(x, kernel_size_list, *, direct_max=None):
    """JAX/Pallas equivalent of the PyTorch series_decomp module.

    x: (B, L, C).  Returns (list_of_moving_means, residual), each (B, L, C).
    """
    B, L, C = x.shape
    ks_tuple = tuple(int(k) for k in kernel_size_list)
    n_out = len(ks_tuple) + 1
    itemsize = jnp.dtype(x.dtype).itemsize
    cap = _vmem_capacity_bytes()
    budget = cap // 2                      # 32 MiB on v7x, 64 MiB on v5e/v6e
    log_l = max(1, (L - 1).bit_length())
    if direct_max is None:
        # Direct window sum up to ~log2(L)+2 taps, prefix-sum beyond.  On v7x (faster
        # HBM, 2 XLU) lowering this toward log2(L) keeps the XLU off the critical path.
        direct_max = log_l + 2
    direct_max = max(2, int(direct_max))

    if C >= 128:
        # ---- Path A: native (bt, L, ct) blocks, channels on lanes ------------------
        bt, ct = _choose_native_block(B, L, C, n_out, itemsize, budget)
        est = _est_native(bt, ct, L, n_out, itemsize)
        blk = pl.BlockSpec((bt, L, ct), lambda b, j: (b, 0, j))
        kernel = functools.partial(_decomp_native_kernel,
                                   kernel_sizes=ks_tuple, direct_max=direct_max)
        outs = pl.pallas_call(
            kernel,
            out_shape=tuple(jax.ShapeDtypeStruct((B, L, C), x.dtype)
                            for _ in range(n_out)),
            grid=(B // bt, C // ct),
            in_specs=[blk],
            out_specs=tuple(blk for _ in range(n_out)),
            compiler_params=pltpu.CompilerParams(
                dimension_semantics=("parallel", "parallel"),
                vmem_limit_bytes=_vmem_limit_bytes(est, cap)),
        )(x)
        return list(outs[:-1]), outs[-1]

    # ---- Path B: C < 128 -> view (L, C) as one dense lane axis ---------------------
    # (B, L, C) -> (B, L*C) is a bitcast-level reshape of a contiguous array (no HBM
    # copy under XLA), so unlike the old fold/unfold transposes this adds zero HBM
    # traffic while keeping every vector op and store lane-dense.
    W = L * C
    x_flat = x.reshape(B, W)
    t_flat = jnp.repeat(jnp.arange(L, dtype=jnp.int32), C).reshape(1, W)
    bt = _choose_flat_block(B, W, n_out, itemsize, budget)
    est = _est_flat(bt, W, n_out, itemsize)
    xblk = pl.BlockSpec((bt, W), lambda b: (b, 0))
    tblk = pl.BlockSpec((1, W), lambda b: (0, 0))   # constant index -> DMA'd once, resident
    kernel = functools.partial(_decomp_flat_kernel, kernel_sizes=ks_tuple,
                               n_chan=C, direct_max=direct_max)
    outs = pl.pallas_call(
        kernel,
        out_shape=tuple(jax.ShapeDtypeStruct((B, W), x.dtype) for _ in range(n_out)),
        grid=(B // bt,),
        in_specs=[tblk, xblk],
        out_specs=tuple(xblk for _ in range(n_out)),
        compiler_params=pltpu.CompilerParams(
            dimension_semantics=("parallel",),
            vmem_limit_bytes=_vmem_limit_bytes(est, cap)),
    )(t_flat, x_flat)
    means = [o.reshape(B, L, C) for o in outs[:-1]]
    return means, outs[-1].reshape(B, L, C)


# ---------------------------- pure-JAX reference ---------------------------- #
def _moving_avg_ref(x, ks):
    pad = ks // 2
    left, right = (pad - 1, pad) if ks % 2 == 0 else (pad, pad)
    front = jnp.repeat(x[:, 0:1, :], left, axis=1)
    end = jnp.repeat(x[:, -1:, :], right, axis=1)
    xp = jnp.concatenate([front, x, end], axis=1)
    L = x.shape[1]
    win = jnp.stack([xp[:, k:k + L, :] for k in range(ks)], axis=0)
    return win.mean(axis=0)


def _series_decomp_ref(x, kernel_size_list):
    res = x
    means = []
    for ks in kernel_size_list:
        m = _moving_avg_ref(res, ks)
        means.append(m)
        res = res - m
    return means, res


if __name__ == "__main__":
    key0, key1 = jax.random.split(jax.random.PRNGKey(0))

    # Path B: narrow channels (C < 128) -> flattened lane layout, no fold/unfold copies.
    # Odd, even and one large kernel size to exercise both direct and prefix paths.
    B, L, C = 2, 16, 8
    ks_list = [3, 4, 5, 12]
    x = jax.random.normal(key0, (B, L, C), dtype=jnp.float32)
    means, res = series_decomp(x, ks_list)
    jax.block_until_ready(res)
    for m in means:
        jax.block_until_ready(m)
    means_ref, res_ref = _series_decomp_ref(x, ks_list)
    for m, mr in zip(means, means_ref):
        assert jnp.allclose(m, mr, atol=1e-5, rtol=1e-5), "moving mean mismatch (flat path)"
    assert jnp.allclose(res, res_ref, atol=1e-5, rtol=1e-5), "residual mismatch (flat path)"

    # Path A: lane-dense channels (C multiple of 128) -> native (bt, L, ct) blocks.
    B2, L2, C2 = 2, 16, 128
    ks_list2 = [3, 4, 25]
    x2 = jax.random.normal(key1, (B2, L2, C2), dtype=jnp.float32)
    means2, res2 = series_decomp(x2, ks_list2)
    jax.block_until_ready(res2)
    means2_ref, res2_ref = _series_decomp_ref(x2, ks_list2)
    for m, mr in zip(means2, means2_ref):
        assert jnp.allclose(m, mr, atol=1e-5, rtol=1e-5), "moving mean mismatch (native path)"
    assert jnp.allclose(res2, res2_ref, atol=1e-5, rtol=1e-5), "residual mismatch (native path)"

    print("KERNEL_OK")
</pallas_src>

<mosaic_0001>
module attributes {stable_mosaic.version = 11 : i64} {
  func.func @_decomp_flat_kernel(%arg0: i32, %arg1: memref<1x128xi32, #tpu.memory_space<vmem>>, %arg2: memref<2x128xf32, #tpu.memory_space<vmem>>, %arg3: memref<2x128xf32, #tpu.memory_space<vmem>>, %arg4: memref<2x128xf32, #tpu.memory_space<vmem>>, %arg5: memref<2x128xf32, #tpu.memory_space<vmem>>, %arg6: memref<2x128xf32, #tpu.memory_space<vmem>>, %arg7: memref<2x128xf32, #tpu.memory_space<vmem>>) attributes {dimension_semantics = [#tpu.dimension_semantics<parallel>], iteration_bounds = array<i64: 1>, scalar_prefetch = 0 : i64, scratch_operands = 0 : i64, tpu.core_type = #tpu.core_type<tc>, window_params = [{pipeline_mode = #tpu.pipeline_mode<synchronous>, transform_indices = @transform_0, window_bounds = array<i64: 1, 128>}, {transform_indices = @transform_1, window_bounds = array<i64: 2, 128>}, {transform_indices = @transform_2, window_bounds = array<i64: 2, 128>}, {transform_indices = @transform_3, window_bounds = array<i64: 2, 128>}, {transform_indices = @transform_4, window_bounds = array<i64: 2, 128>}, {transform_indices = @transform_5, window_bounds = array<i64: 2, 128>}, {transform_indices = @transform_6, window_bounds = array<i64: 2, 128>}]} {
    %c0 = arith.constant 0 : index
    %c0_0 = arith.constant 0 : index
    %0 = vector.load %arg2[%c0, %c0_0] : memref<2x128xf32, #tpu.memory_space<vmem>>, vector<2x128xf32>
    %c0_1 = arith.constant 0 : index
    %c0_2 = arith.constant 0 : index
    %1 = vector.load %arg1[%c0_1, %c0_2] : memref<1x128xi32, #tpu.memory_space<vmem>>, vector<1x128xi32>
    %2 = tpu.iota {dimensions = array<i32: 1>} : vector<1x128xi32>
    %c0_i32 = arith.constant 0 : i32
    %3 = vector.broadcast %c0_i32 : i32 to vector<1x128xi32>
    %4 = arith.cmpi sge, %2, %3 : vector<1x128xi32>
    %c8_i32 = arith.constant 8 : i32
    %5 = vector.broadcast %c8_i32 : i32 to vector<1x128xi32>
    %6 = arith.cmpi slt, %2, %5 : vector<1x128xi32>
    %7 = arith.andi %4, %6 : vector<1x128xi1>
    %cst = arith.constant 0.000000e+00 : f32
    %8 = vector.shape_cast %7 : vector<1x128xi1> to vector<1x128xi1>
    %9 = vector.broadcast %8 : vector<1x128xi1> to vector<2x128xi1>
    %10 = vector.broadcast %cst : f32 to vector<2x128xf32>
    %11 = arith.select %9, %0, %10 : vector<2x128xi1>, vector<2x128xf32>
    %c8_i32_3 = arith.constant 8 : i32
    %12 = vector.broadcast %c8_i32_3 : i32 to vector<1x128xi32>
    %13 = arith.cmpi sge, %2, %12 : vector<1x128xi32>
    %c8_i32_4 = arith.constant 8 : i32
    %14 = tpu.dynamic_rotate %11 by %c8_i32_4 dim 1 : vector<2x128xf32>, i32 -> vector<2x128xf32>
    %cst_5 = arith.constant 0.000000e+00 : f32
    %15 = vector.shape_cast %13 : vector<1x128xi1> to vector<1x128xi1>
    %16 = vector.broadcast %15 : vector<1x128xi1> to vector<2x128xi1>
    %17 = vector.broadcast %cst_5 : f32 to vector<2x128xf32>
    %18 = arith.select %16, %14, %17 : vector<2x128xi1>, vector<2x128xf32>
    %19 = arith.addf %11, %18 : vector<2x128xf32>
    %c16_i32 = arith.constant 16 : i32
    %20 = vector.broadcast %c16_i32 : i32 to vector<1x128xi32>
    %21 = arith.cmpi sge, %2, %20 : vector<1x128xi32>
    %c16_i32_6 = arith.constant 16 : i32
    %22 = tpu.dynamic_rotate %19 by %c16_i32_6 dim 1 : vector<2x128xf32>, i32 -> vector<2x128xf32>
    %cst_7 = arith.constant 0.000000e+00 : f32
    %23 = vector.shape_cast %21 : vector<1x128xi1> to vector<1x128xi1>
    %24 = vector.broadcast %23 : vector<1x128xi1> to vector<2x128xi1>
    %25 = vector.broadcast %cst_7 : f32 to vector<2x128xf32>
    %26 = arith.select %24, %22, %25 : vector<2x128xi1>, vector<2x128xf32>
    %27 = arith.addf %19, %26 : vector<2x128xf32>
    %c32_i32 = arith.constant 32 : i32
    %28 = vector.broadcast %c32_i32 : i32 to vector<1x128xi32>
    %29 = arith.cmpi sge, %2, %28 : vector<1x128xi32>
    %c32_i32_8 = arith.constant 32 : i32
    %30 = tpu.dynamic_rotate %27 by %c32_i32_8 dim 1 : vector<2x128xf32>, i32 -> vector<2x128xf32>
    %cst_9 = arith.constant 0.000000e+00 : f32
    %31 = vector.shape_cast %29 : vector<1x128xi1> to vector<1x128xi1>
    %32 = vector.broadcast %31 : vector<1x128xi1> to vector<2x128xi1>
    %33 = vector.broadcast %cst_9 : f32 to vector<2x128xf32>
    %34 = arith.select %32, %30, %33 : vector<2x128xi1>, vector<2x128xf32>
    %35 = arith.addf %27, %34 : vector<2x128xf32>
    %c64_i32 = arith.constant 64 : i32
    %36 = vector.broadcast %c64_i32 : i32 to vector<1x128xi32>
    %37 = arith.cmpi sge, %2, %36 : vector<1x128xi32>
    %c64_i32_10 = arith.constant 64 : i32
    %38 = tpu.dynamic_rotate %35 by %c64_i32_10 dim 1 : vector<2x128xf32>, i32 -> vector<2x128xf32>
    %cst_11 = arith.constant 0.000000e+00 : f32
    %39 = vector.shape_cast %37 : vector<1x128xi1> to vector<1x128xi1>
    %40 = vector.broadcast %39 : vector<1x128xi1> to vector<2x128xi1>
    %41 = vector.broadcast %cst_11 : f32 to vector<2x128xf32>
    %42 = arith.select %40, %38, %41 : vector<2x128xi1>, vector<2x128xf32>
    %43 = arith.addf %35, %42 : vector<2x128xf32>
    %c120_i32 = arith.constant 120 : i32
    %44 = vector.broadcast %c120_i32 : i32 to vector<1x128xi32>
    %45 = arith.cmpi sge, %2, %44 : vector<1x128xi32>
    %c128_i32 = arith.constant 128 : i32
    %46 = vector.broadcast %c128_i32 : i32 to vector<1x128xi32>
    %47 = arith.cmpi slt, %2, %46 : vector<1x128xi32>
    %48 = arith.andi %45, %47 : vector<1x128xi1>
    %cst_12 = arith.constant 0.000000e+00 : f32
    %49 = vector.shape_cast %48 : vector<1x128xi1> to vector<1x128xi1>
    %50 = vector.broadcast %49 : vector<1x128xi1> to vector<2x128xi1>
    %51 = vector.broadcast %cst_12 : f32 to vector<2x128xf32>
    %52 = arith.select %50, %0, %51 : vector<2x128xi1>, vector<2x128xf32>
    %c120_i32_13 = arith.constant 120 : i32
    %53 = vector.broadcast %c120_i32_13 : i32 to vector<1x128xi32>
    %54 = arith.cmpi slt, %2, %53 : vector<1x128xi32>
    %c120_i32_14 = arith.constant 120 : i32
    %55 = tpu.dynamic_rotate %52 by %c120_i32_14 dim 1 : vector<2x128xf32>, i32 -> vector<2x128xf32>
    %cst_15 = arith.constant 0.000000e+00 : f32
    %56 = vector.shape_cast %54 : vector<1x128xi1> to vector<1x128xi1>
    %57 = vector.broadcast %56 : vector<1x128xi1> to vector<2x128xi1>
    %58 = vector.broadcast %cst_15 : f32 to vector<2x128xf32>
    %59 = arith.select %57, %55, %58 : vector<2x128xi1>, vector<2x128xf32>
    %60 = arith.addf %52, %59 : vector<2x128xf32>
    %c112_i32 = arith.constant 112 : i32
    %61 = vector.broadcast %c112_i32 : i32 to vector<1x128xi32>
    %62 = arith.cmpi slt, %2, %61 : vector<1x128xi32>
    %c112_i32_16 = arith.constant 112 : i32
    %63 = tpu.dynamic_rotate %60 by %c112_i32_16 dim 1 : vector<2x128xf32>, i32 -> vector<2x128xf32>
    %cst_17 = arith.constant 0.000000e+00 : f32
    %64 = vector.shape_cast %62 : vector<1x128xi1> to vector<1x128xi1>
    %65 = vector.broadcast %64 : vector<1x128xi1> to vector<2x128xi1>
    %66 = vector.broadcast %cst_17 : f32 to vector<2x128xf32>
    %67 = arith.select %65, %63, %66 : vector<2x128xi1>, vector<2x128xf32>
    %68 = arith.addf %60, %67 : vector<2x128xf32>
    %c96_i32 = arith.constant 96 : i32
    %69 = vector.broadcast %c96_i32 : i32 to vector<1x128xi32>
    %70 = arith.cmpi slt, %2, %69 : vector<1x128xi32>
    %c96_i32_18 = arith.constant 96 : i32
    %71 = tpu.dynamic_rotate %68 by %c96_i32_18 dim 1 : vector<2x128xf32>, i32 -> vector<2x128xf32>
    %cst_19 = arith.constant 0.000000e+00 : f32
    %72 = vector.shape_cast %70 : vector<1x128xi1> to vector<1x128xi1>
    %73 = vector.broadcast %72 : vector<1x128xi1> to vector<2x128xi1>
    %74 = vector.broadcast %cst_19 : f32 to vector<2x128xf32>
    %75 = arith.select %73, %71, %74 : vector<2x128xi1>, vector<2x128xf32>
    %76 = arith.addf %68, %75 : vector<2x128xf32>
    %c64_i32_20 = arith.constant 64 : i32
    %77 = vector.broadcast %c64_i32_20 : i32 to vector<1x128xi32>
    %78 = arith.cmpi slt, %2, %77 : vector<1x128xi32>
    %c64_i32_21 = arith.constant 64 : i32
    %79 = tpu.dynamic_rotate %76 by %c64_i32_21 dim 1 : vector<2x128xf32>, i32 -> vector<2x128xf32>
    %cst_22 = arith.constant 0.000000e+00 : f32
    %80 = vector.shape_cast %78 : vector<1x128xi1> to vector<1x128xi1>
    %81 = vector.broadcast %80 : vector<1x128xi1> to vector<2x128xi1>
    %82 = vector.broadcast %cst_22 : f32 to vector<2x128xf32>
    %83 = arith.select %81, %79, %82 : vector<2x128xi1>, vector<2x128xf32>
    %84 = arith.addf %76, %83 : vector<2x128xf32>
    %c8_i32_23 = arith.constant 8 : i32
    %85 = tpu.dynamic_rotate %0 by %c8_i32_23 dim 1 : vector<2x128xf32>, i32 -> vector<2x128xf32>
    %c1_i32 = arith.constant 1 : i32
    %86 = vector.broadcast %c1_i32 : i32 to vector<1x128xi32>
    %87 = arith.cmpi sge, %1, %86 : vector<1x128xi32>
    %88 = vector.shape_cast %87 : vector<1x128xi1> to vector<1x128xi1>
    %89 = vector.broadcast %88 : vector<1x128xi1> to vector<2x128xi1>
    %90 = arith.select %89, %85, %43 : vector<2x128xi1>, vector<2x128xf32>
    %91 = arith.addf %0, %90 : vector<2x128xf32>
    %c120_i32_24 = arith.constant 120 : i32
    %92 = tpu.dynamic_rotate %0 by %c120_i32_24 dim 1 : vector<2x128xf32>, i32 -> vector<2x128xf32>
    %c14_i32 = arith.constant 14 : i32
    %93 = vector.broadcast %c14_i32 : i32 to vector<1x128xi32>
    %94 = arith.cmpi sle, %1, %93 : vector<1x128xi32>
    %95 = vector.shape_cast %94 : vector<1x128xi1> to vector<1x128xi1>
    %96 = vector.broadcast %95 : vector<1x128xi1> to vector<2x128xi1>
    %97 = arith.select %96, %92, %84 : vector<2x128xi1>, vector<2x128xf32>
    %98 = arith.addf %91, %97 : vector<2x128xf32>
    %cst_25 = arith.constant 0.333333343 : f32
    %99 = vector.broadcast %cst_25 : f32 to vector<2x128xf32>
    %100 = arith.mulf %98, %99 : vector<2x128xf32>
    %c0_26 = arith.constant 0 : index
    %c0_27 = arith.constant 0 : index
    %101 = vector.load %arg3[%c0_26, %c0_27] : memref<2x128xf32, #tpu.memory_space<vmem>>, vector<2x128xf32>
    tpu.vector_store %arg3[%c0_26, %c0_27], %100 {strides = array<i32>} : memref<2x128xf32, #tpu.memory_space<vmem>>, vector<2x128xf32>,
    %102 = arith.subf %0, %100 : vector<2x128xf32>
    %c0_i32_28 = arith.constant 0 : i32
    %103 = vector.broadcast %c0_i32_28 : i32 to vector<1x128xi32>
    %104 = arith.cmpi sge, %2, %103 : vector<1x128xi32>
    %c8_i32_29 = arith.constant 8 : i32
    %105 = vector.broadcast %c8_i32_29 : i32 to vector<1x128xi32>
    %106 = arith.cmpi slt, %2, %105 : vector<1x128xi32>
    %107 = arith.andi %104, %106 : vector<1x128xi1>
    %cst_30 = arith.constant 0.000000e+00 : f32
    %108 = vector.shape_cast %107 : vector<1x128xi1> to vector<1x128xi1>
    %109 = vector.broadcast %108 : vector<1x128xi1> to vector<2x128xi1>
    %110 = vector.broadcast %cst_30 : f32 to vector<2x128xf32>
    %111 = arith.select %109, %102, %110 : vector<2x128xi1>, vector<2x128xf32>
    %c8_i32_31 = arith.constant 8 : i32
    %112 = vector.broadcast %c8_i32_31 : i32 to vector<1x128xi32>
    %113 = arith.cmpi sge, %2, %112 : vector<1x128xi32>
    %c8_i32_32 = arith.constant 8 : i32
    %114 = tpu.dynamic_rotate %111 by %c8_i32_32 dim 1 : vector<2x128xf32>, i32 -> vector<2x128xf32>
    %cst_33 = arith.constant 0.000000e+00 : f32
    %115 = vector.shape_cast %113 : vector<1x128xi1> to vector<1x128xi1>
    %116 = vector.broadcast %115 : vector<1x128xi1> to vector<2x128xi1>
    %117 = vector.broadcast %cst_33 : f32 to vector<2x128xf32>
    %118 = arith.select %116, %114, %117 : vector<2x128xi1>, vector<2x128xf32>
    %119 = arith.addf %111, %118 : vector<2x128xf32>
    %c16_i32_34 = arith.constant 16 : i32
    %120 = vector.broadcast %c16_i32_34 : i32 to vector<1x128xi32>
    %121 = arith.cmpi sge, %2, %120 : vector<1x128xi32>
    %c16_i32_35 = arith.constant 16 : i32
    %122 = tpu.dynamic_rotate %119 by %c16_i32_35 dim 1 : vector<2x128xf32>, i32 -> vector<2x128xf32>
    %cst_36 = arith.constant 0.000000e+00 : f32
    %123 = vector.shape_cast %121 : vector<1x128xi1> to vector<1x128xi1>
    %124 = vector.broadcast %123 : vector<1x128xi1> to vector<2x128xi1>
    %125 = vector.broadcast %cst_36 : f32 to vector<2x128xf32>
    %126 = arith.select %124, %122, %125 : vector<2x128xi1>, vector<2x128xf32>
    %127 = arith.addf %119, %126 : vector<2x128xf32>
    %c32_i32_37 = arith.constant 32 : i32
    %128 = vector.broadcast %c32_i32_37 : i32 to vector<1x128xi32>
    %129 = arith.cmpi sge, %2, %128 : vector<1x128xi32>
    %c32_i32_38 = arith.constant 32 : i32
    %130 = tpu.dynamic_rotate %127 by %c32_i32_38 dim 1 : vector<2x128xf32>, i32 -> vector<2x128xf32>
    %cst_39 = arith.constant 0.000000e+00 : f32
    %131 = vector.shape_cast %129 : vector<1x128xi1> to vector<1x128xi1>
    %132 = vector.broadcast %131 : vector<1x128xi1> to vector<2x128xi1>
    %133 = vector.broadcast %cst_39 : f32 to vector<2x128xf32>
    %134 = arith.select %132, %130, %133 : vector<2x128xi1>, vector<2x128xf32>
    %135 = arith.addf %127, %134 : vector<2x128xf32>
    %c64_i32_40 = arith.constant 64 : i32
    %136 = vector.broadcast %c64_i32_40 : i32 to vector<1x128xi32>
    %137 = arith.cmpi sge, %2, %136 : vector<1x128xi32>
    %c64_i32_41 = arith.constant 64 : i32
    %138 = tpu.dynamic_rotate %135 by %c64_i32_41 dim 1 : vector<2x128xf32>, i32 -> vector<2x128xf32>
    %cst_42 = arith.constant 0.000000e+00 : f32
    %139 = vector.shape_cast %137 : vector<1x128xi1> to vector<1x128xi1>
    %140 = vector.broadcast %139 : vector<1x128xi1> to vector<2x128xi1>
    %141 = vector.broadcast %cst_42 : f32 to vector<2x128xf32>
    %142 = arith.select %140, %138, %141 : vector<2x128xi1>, vector<2x128xf32>
    %143 = arith.addf %135, %142 : vector<2x128xf32>
    %c120_i32_43 = arith.constant 120 : i32
    %144 = vector.broadcast %c120_i32_43 : i32 to vector<1x128xi32>
    %145 = arith.cmpi sge, %2, %144 : vector<1x128xi32>
    %c128_i32_44 = arith.constant 128 : i32
    %146 = vector.broadcast %c128_i32_44 : i32 to vector<1x128xi32>
    %147 = arith.cmpi slt, %2, %146 : vector<1x128xi32>
    %148 = arith.andi %145, %147 : vector<1x128xi1>
    %cst_45 = arith.constant 0.000000e+00 : f32
    %149 = vector.shape_cast %148 : vector<1x128xi1> to vector<1x128xi1>
    %150 = vector.broadcast %149 : vector<1x128xi1> to vector<2x128xi1>
    %151 = vector.broadcast %cst_45 : f32 to vector<2x128xf32>
    %152 = arith.select %150, %102, %151 : vector<2x128xi1>, vector<2x128xf32>
    %c120_i32_46 = arith.constant 120 : i32
    %153 = vector.broadcast %c120_i32_46 : i32 to vector<1x128xi32>
    %154 = arith.cmpi slt, %2, %153 : vector<1x128xi32>
    %c120_i32_47 = arith.constant 120 : i32
    %155 = tpu.dynamic_rotate %152 by %c120_i32_47 dim 1 : vector<2x128xf32>, i32 -> vector<2x128xf32>
    %cst_48 = arith.constant 0.000000e+00 : f32
    %156 = vector.shape_cast %154 : vector<1x128xi1> to vector<1x128xi1>
    %157 = vector.broadcast %156 : vector<1x128xi1> to vector<2x128xi1>
    %158 = vector.broadcast %cst_48 : f32 to vector<2x128xf32>
    %159 = arith.select %157, %155, %158 : vector<2x128xi1>, vector<2x128xf32>
    %160 = arith.addf %152, %159 : vector<2x128xf32>
    %c112_i32_49 = arith.constant 112 : i32
    %161 = vector.broadcast %c112_i32_49 : i32 to vector<1x128xi32>
    %162 = arith.cmpi slt, %2, %161 : vector<1x128xi32>
    %c112_i32_50 = arith.constant 112 : i32
    %163 = tpu.dynamic_rotate %160 by %c112_i32_50 dim 1 : vector<2x128xf32>, i32 -> vector<2x128xf32>
    %cst_51 = arith.constant 0.000000e+00 : f32
    %164 = vector.shape_cast %162 : vector<1x128xi1> to vector<1x128xi1>
    %165 = vector.broadcast %164 : vector<1x128xi1> to vector<2x128xi1>
    %166 = vector.broadcast %cst_51 : f32 to vector<2x128xf32>
    %167 = arith.select %165, %163, %166 : vector<2x128xi1>, vector<2x128xf32>
    %168 = arith.addf %160, %167 : vector<2x128xf32>
    %c96_i32_52 = arith.constant 96 : i32
    %169 = vector.broadcast %c96_i32_52 : i32 to vector<1x128xi32>
    %170 = arith.cmpi slt, %2, %169 : vector<1x128xi32>
    %c96_i32_53 = arith.constant 96 : i32
    %171 = tpu.dynamic_rotate %168 by %c96_i32_53 dim 1 : vector<2x128xf32>, i32 -> vector<2x128xf32>
    %cst_54 = arith.constant 0.000000e+00 : f32
    %172 = vector.shape_cast %170 : vector<1x128xi1> to vector<1x128xi1>
    %173 = vector.broadcast %172 : vector<1x128xi1> to vector<2x128xi1>
    %174 = vector.broadcast %cst_54 : f32 to vector<2x128xf32>
    %175 = arith.select %173, %171, %174 : vector<2x128xi1>, vector<2x128xf32>
    %176 = arith.addf %168, %175 : vector<2x128xf32>
    %c64_i32_55 = arith.constant 64 : i32
    %177 = vector.broadcast %c64_i32_55 : i32 to vector<1x128xi32>
    %178 = arith.cmpi slt, %2, %177 : vector<1x128xi32>
    %c64_i32_56 = arith.constant 64 : i32
    %179 = tpu.dynamic_rotate %176 by %c64_i32_56 dim 1 : vector<2x128xf32>, i32 -> vector<2x128xf32>
    %cst_57 = arith.constant 0.000000e+00 : f32
    %180 = vector.shape_cast %178 : vector<1x128xi1> to vector<1x128xi1>
    %181 = vector.broadcast %180 : vector<1x128xi1> to vector<2x128xi1>
    %182 = vector.broadcast %cst_57 : f32 to vector<2x128xf32>
    %183 = arith.select %181, %179, %182 : vector<2x128xi1>, vector<2x128xf32>
    %184 = arith.addf %176, %183 : vector<2x128xf32>
    %c8_i32_58 = arith.constant 8 : i32
    %185 = tpu.dynamic_rotate %102 by %c8_i32_58 dim 1 : vector<2x128xf32>, i32 -> vector<2x128xf32>
    %c1_i32_59 = arith.constant 1 : i32
    %186 = vector.broadcast %c1_i32_59 : i32 to vector<1x128xi32>
    %187 = arith.cmpi sge, %1, %186 : vector<1x128xi32>
    %188 = vector.shape_cast %187 : vector<1x128xi1> to vector<1x128xi1>
    %189 = vector.broadcast %188 : vector<1x128xi1> to vector<2x128xi1>
    %190 = arith.select %189, %185, %143 : vector<2x128xi1>, vector<2x128xf32>
    %191 = arith.addf %102, %190 : vector<2x128xf32>
    %c120_i32_60 = arith.constant 120 : i32
    %192 = tpu.dynamic_rotate %102 by %c120_i32_60 dim 1 : vector<2x128xf32>, i32 -> vector<2x128xf32>
    %c14_i32_61 = arith.constant 14 : i32
    %193 = vector.broadcast %c14_i32_61 : i32 to vector<1x128xi32>
    %194 = arith.cmpi sle, %1, %193 : vector<1x128xi32>
    %195 = vector.shape_cast %194 : vector<1x128xi1> to vector<1x128xi1>
    %196 = vector.broadcast %195 : vector<1x128xi1> to vector<2x128xi1>
    %197 = arith.select %196, %192, %184 : vector<2x128xi1>, vector<2x128xf32>
    %198 = arith.addf %191, %197 : vector<2x128xf32>
    %c112_i32_62 = arith.constant 112 : i32
    %199 = tpu.dynamic_rotate %102 by %c112_i32_62 dim 1 : vector<2x128xf32>, i32 -> vector<2x128xf32>
    %c13_i32 = arith.constant 13 : i32
    %200 = vector.broadcast %c13_i32 : i32 to vector<1x128xi32>
    %201 = arith.cmpi sle, %1, %200 : vector<1x128xi32>
    %202 = vector.shape_cast %201 : vector<1x128xi1> to vector<1x128xi1>
    %203 = vector.broadcast %202 : vector<1x128xi1> to vector<2x128xi1>
    %204 = arith.select %203, %199, %184 : vector<2x128xi1>, vector<2x128xf32>
    %205 = arith.addf %198, %204 : vector<2x128xf32>
    %cst_63 = arith.constant 2.500000e-01 : f32
    %206 = vector.broadcast %cst_63 : f32 to vector<2x128xf32>
    %207 = arith.mulf %205, %206 : vector<2x128xf32>
    %c0_64 = arith.constant 0 : index
    %c0_65 = arith.constant 0 : index
    %208 = vector.load %arg4[%c0_64, %c0_65] : memref<2x128xf32, #tpu.memory_space<vmem>>, vector<2x128xf32>
    tpu.vector_store %arg4[%c0_64, %c0_65], %207 {strides = array<i32>} : memref<2x128xf32, #tpu.memory_space<vmem>>, vector<2x128xf32>,
    %209 = arith.subf %102, %207 : vector<2x128xf32>
    %c0_i32_66 = arith.constant 0 : i32
    %210 = vector.broadcast %c0_i32_66 : i32 to vector<1x128xi32>
    %211 = arith.cmpi sge, %2, %210 : vector<1x128xi32>
    %c8_i32_67 = arith.constant 8 : i32
    %212 = vector.broadcast %c8_i32_67 : i32 to vector<1x128xi32>
    %213 = arith.cmpi slt, %2, %212 : vector<1x128xi32>
    %214 = arith.andi %211, %213 : vector<1x128xi1>
    %cst_68 = arith.constant 0.000000e+00 : f32
    %215 = vector.shape_cast %214 : vector<1x128xi1> to vector<1x128xi1>
    %216 = vector.broadcast %215 : vector<1x128xi1> to vector<2x128xi1>
    %217 = vector.broadcast %cst_68 : f32 to vector<2x128xf32>
    %218 = arith.select %216, %209, %217 : vector<2x128xi1>, vector<2x128xf32>
    %c8_i32_69 = arith.constant 8 : i32
    %219 = vector.broadcast %c8_i32_69 : i32 to vector<1x128xi32>
    %220 = arith.cmpi sge, %2, %219 : vector<1x128xi32>
    %c8_i32_70 = arith.constant 8 : i32
    %221 = tpu.dynamic_rotate %218 by %c8_i32_70 dim 1 : vector<2x128xf32>, i32 -> vector<2x128xf32>
    %cst_71 = arith.constant 0.000000e+00 : f32
    %222 = vector.shape_cast %220 : vector<1x128xi1> to vector<1x128xi1>
    %223 = vector.broadcast %222 : vector<1x128xi1> to vector<2x128xi1>
    %224 = vector.broadcast %cst_71 : f32 to vector<2x128xf32>
    %225 = arith.select %223, %221, %224 : vector<2x128xi1>, vector<2x128xf32>
    %226 = arith.addf %218, %225 : vector<2x128xf32>
    %c16_i32_72 = arith.constant 16 : i32
    %227 = vector.broadcast %c16_i32_72 : i32 to vector<1x128xi32>
    %228 = arith.cmpi sge, %2, %227 : vector<1x128xi32>
    %c16_i32_73 = arith.constant 16 : i32
    %229 = tpu.dynamic_rotate %226 by %c16_i32_73 dim 1 : vector<2x128xf32>, i32 -> vector<2x128xf32>
    %cst_74 = arith.constant 0.000000e+00 : f32
    %230 = vector.shape_cast %228 : vector<1x128xi1> to vector<1x128xi1>
    %231 = vector.broadcast %230 : vector<1x128xi1> to vector<2x128xi1>
    %232 = vector.broadcast %cst_74 : f32 to vector<2x128xf32>
    %233 = arith.select %231, %229, %232 : vector<2x128xi1>, vector<2x128xf32>
    %234 = arith.addf %226, %233 : vector<2x128xf32>
    %c32_i32_75 = arith.constant 32 : i32
    %235 = vector.broadcast %c32_i32_75 : i32 to vector<1x128xi32>
    %236 = arith.cmpi sge, %2, %235 : vector<1x128xi32>
    %c32_i32_76 = arith.constant 32 : i32
    %237 = tpu.dynamic_rotate %234 by %c32_i32_76 dim 1 : vector<2x128xf32>, i32 -> vector<2x128xf32>
    %cst_77 = arith.constant 0.000000e+00 : f32
    %238 = vector.shape_cast %236 : vector<1x128xi1> to vector<1x128xi1>
    %239 = vector.broadcast %238 : vector<1x128xi1> to vector<2x128xi1>
    %240 = vector.broadcast %cst_77 : f32 to vector<2x128xf32>
    %241 = arith.select %239, %237, %240 : vector<2x128xi1>, vector<2x128xf32>
    %242 = arith.addf %234, %241 : vector<2x128xf32>
    %c64_i32_78 = arith.constant 64 : i32
    %243 = vector.broadcast %c64_i32_78 : i32 to vector<1x128xi32>
    %244 = arith.cmpi sge, %2, %243 : vector<1x128xi32>
    %c64_i32_79 = arith.constant 64 : i32
    %245 = tpu.dynamic_rotate %242 by %c64_i32_79 dim 1 : vector<2x128xf32>, i32 -> vector<2x128xf32>
    %cst_80 = arith.constant 0.000000e+00 : f32
    %246 = vector.shape_cast %244 : vector<1x128xi1> to vector<1x128xi1>
    %247 = vector.broadcast %246 : vector<1x128xi1> to vector<2x128xi1>
    %248 = vector.broadcast %cst_80 : f32 to vector<2x128xf32>
    %249 = arith.select %247, %245, %248 : vector<2x128xi1>, vector<2x128xf32>
    %250 = arith.addf %242, %249 : vector<2x128xf32>
    %c120_i32_81 = arith.constant 120 : i32
    %251 = vector.broadcast %c120_i32_81 : i32 to vector<1x128xi32>
    %252 = arith.cmpi sge, %2, %251 : vector<1x128xi32>
    %c128_i32_82 = arith.constant 128 : i32
    %253 = vector.broadcast %c128_i32_82 : i32 to vector<1x128xi32>
    %254 = arith.cmpi slt, %2, %253 : vector<1x128xi32>
    %255 = arith.andi %252, %254 : vector<1x128xi1>
    %cst_83 = arith.constant 0.000000e+00 : f32
    %256 = vector.shape_cast %255 : vector<1x128xi1> to vector<1x128xi1>
    %257 = vector.broadcast %256 : vector<1x128xi1> to vector<2x128xi1>
    %258 = vector.broadcast %cst_83 : f32 to vector<2x128xf32>
    %259 = arith.select %257, %209, %258 : vector<2x128xi1>, vector<2x128xf32>
    %c120_i32_84 = arith.constant 120 : i32
    %260 = vector.broadcast %c120_i32_84 : i32 to vector<1x128xi32>
    %261 = arith.cmpi slt, %2, %260 : vector<1x128xi32>
    %c120_i32_85 = arith.constant 120 : i32
    %262 = tpu.dynamic_rotate %259 by %c120_i32_85 dim 1 : vector<2x128xf32>, i32 -> vector<2x128xf32>
    %cst_86 = arith.constant 0.000000e+00 : f32
    %263 = vector.shape_cast %261 : vector<1x128xi1> to vector<1x128xi1>
    %264 = vector.broadcast %263 : vector<1x128xi1> to vector<2x128xi1>
    %265 = vector.broadcast %cst_86 : f32 to vector<2x128xf32>
    %266 = arith.select %264, %262, %265 : vector<2x128xi1>, vector<2x128xf32>
    %267 = arith.addf %259, %266 : vector<2x128xf32>
    %c112_i32_87 = arith.constant 112 : i32
    %268 = vector.broadcast %c112_i32_87 : i32 to vector<1x128xi32>
    %269 = arith.cmpi slt, %2, %268 : vector<1x128xi32>
    %c112_i32_88 = arith.constant 112 : i32
    %270 = tpu.dynamic_rotate %267 by %c112_i32_88 dim 1 : vector<2x128xf32>, i32 -> vector<2x128xf32>
    %cst_89 = arith.constant 0.000000e+00 : f32
    %271 = vector.shape_cast %269 : vector<1x128xi1> to vector<1x128xi1>
    %272 = vector.broadcast %271 : vector<1x128xi1> to vector<2x128xi1>
    %273 = vector.broadcast %cst_89 : f32 to vector<2x128xf32>
    %274 = arith.select %272, %270, %273 : vector<2x128xi1>, vector<2x128xf32>
    %275 = arith.addf %267, %274 : vector<2x128xf32>
    %c96_i32_90 = arith.constant 96 : i32
    %276 = vector.broadcast %c96_i32_90 : i32 to vector<1x128xi32>
    %277 = arith.cmpi slt, %2, %276 : vector<1x128xi32>
    %c96_i32_91 = arith.constant 96 : i32
    %278 = tpu.dynamic_rotate %275 by %c96_i32_91 dim 1 : vector<2x128xf32>, i32 -> vector<2x128xf32>
    %cst_92 = arith.constant 0.000000e+00 : f32
    %279 = vector.shape_cast %277 : vector<1x128xi1> to vector<1x128xi1>
    %280 = vector.broadcast %279 : vector<1x128xi1> to vector<2x128xi1>
    %281 = vector.broadcast %cst_92 : f32 to vector<2x128xf32>
    %282 = arith.select %280, %278, %281 : vector<2x128xi1>, vector<2x128xf32>
    %283 = arith.addf %275, %282 : vector<2x128xf32>
    %c64_i32_93 = arith.constant 64 : i32
    %284 = vector.broadcast %c64_i32_93 : i32 to vector<1x128xi32>
    %285 = arith.cmpi slt, %2, %284 : vector<1x128xi32>
    %c64_i32_94 = arith.constant 64 : i32
    %286 = tpu.dynamic_rotate %283 by %c64_i32_94 dim 1 : vector<2x128xf32>, i32 -> vector<2x128xf32>
    %cst_95 = arith.constant 0.000000e+00 : f32
    %287 = vector.shape_cast %285 : vector<1x128xi1> to vector<1x128xi1>
    %288 = vector.broadcast %287 : vector<1x128xi1> to vector<2x128xi1>
    %289 = vector.broadcast %cst_95 : f32 to vector<2x128xf32>
    %290 = arith.select %288, %286, %289 : vector<2x128xi1>, vector<2x128xf32>
    %291 = arith.addf %283, %290 : vector<2x128xf32>
    %c16_i32_96 = arith.constant 16 : i32
    %292 = tpu.dynamic_rotate %209 by %c16_i32_96 dim 1 : vector<2x128xf32>, i32 -> vector<2x128xf32>
    %c2_i32 = arith.constant 2 : i32
    %293 = vector.broadcast %c2_i32 : i32 to vector<1x128xi32>
    %294 = arith.cmpi sge, %1, %293 : vector<1x128xi32>
    %295 = vector.shape_cast %294 : vector<1x128xi1> to vector<1x128xi1>
    %296 = vector.broadcast %295 : vector<1x128xi1> to vector<2x128xi1>
    %297 = arith.select %296, %292, %250 : vector<2x128xi1>, vector<2x128xf32>
    %298 = arith.addf %209, %297 : vector<2x128xf32>
    %c8_i32_97 = arith.constant 8 : i32
    %299 = tpu.dynamic_rotate %209 by %c8_i32_97 dim 1 : vector<2x128xf32>, i32 -> vector<2x128xf32>
    %c1_i32_98 = arith.constant 1 : i32
    %300 = vector.broadcast %c1_i32_98 : i32 to vector<1x128xi32>
    %301 = arith.cmpi sge, %1, %300 : vector<1x128xi32>
    %302 = vector.shape_cast %301 : vector<1x128xi1> to vector<1x128xi1>
    %303 = vector.broadcast %302 : vector<1x128xi1> to vector<2x128xi1>
    %304 = arith.select %303, %299, %250 : vector<2x128xi1>, vector<2x128xf32>
    %305 = arith.addf %298, %304 : vector<2x128xf32>
    %c120_i32_99 = arith.constant 120 : i32
    %306 = tpu.dynamic_rotate %209 by %c120_i32_99 dim 1 : vector<2x128xf32>, i32 -> vector<2x128xf32>
    %c14_i32_100 = arith.constant 14 : i32
    %307 = vector.broadcast %c14_i32_100 : i32 to vector<1x128xi32>
    %308 = arith.cmpi sle, %1, %307 : vector<1x128xi32>
    %309 = vector.shape_cast %308 : vector<1x128xi1> to vector<1x128xi1>
    %310 = vector.broadcast %309 : vector<1x128xi1> to vector<2x128xi1>
    %311 = arith.select %310, %306, %291 : vector<2x128xi1>, vector<2x128xf32>
    %312 = arith.addf %305, %311 : vector<2x128xf32>
    %c112_i32_101 = arith.constant 112 : i32
    %313 = tpu.dynamic_rotate %209 by %c112_i32_101 dim 1 : vector<2x128xf32>, i32 -> vector<2x128xf32>
    %c13_i32_102 = arith.constant 13 : i32
    %314 = vector.broadcast %c13_i32_102 : i32 to vector<1x128xi32>
    %315 = arith.cmpi sle, %1, %314 : vector<1x128xi32>
    %316 = vector.shape_cast %315 : vector<1x128xi1> to vector<1x128xi1>
    %317 = vector.broadcast %316 : vector<1x128xi1> to vector<2x128xi1>
    %318 = arith.select %317, %313, %291 : vector<2x128xi1>, vector<2x128xf32>
    %319 = arith.addf %312, %318 : vector<2x128xf32>
    %cst_103 = arith.constant 2.000000e-01 : f32
    %320 = vector.broadcast %cst_103 : f32 to vector<2x128xf32>
    %321 = arith.mulf %319, %320 : vector<2x128xf32>
    %c0_104 = arith.constant 0 : index
    %c0_105 = arith.constant 0 : index
    %322 = vector.load %arg5[%c0_104, %c0_105] : memref<2x128xf32, #tpu.memory_space<vmem>>, vector<2x128xf32>
    tpu.vector_store %arg5[%c0_104, %c0_105], %321 {strides = array<i32>} : memref<2x128xf32, #tpu.memory_space<vmem>>, vector<2x128xf32>,
    %323 = arith.subf %209, %321 : vector<2x128xf32>
    %c0_i32_106 = arith.constant 0 : i32
    %324 = vector.broadcast %c0_i32_106 : i32 to vector<1x128xi32>
    %325 = arith.cmpi sge, %2, %324 : vector<1x128xi32>
    %c8_i32_107 = arith.constant 8 : i32
    %326 = vector.broadcast %c8_i32_107 : i32 to vector<1x128xi32>
    %327 = arith.cmpi slt, %2, %326 : vector<1x128xi32>
    %328 = arith.andi %325, %327 : vector<1x128xi1>
    %cst_108 = arith.constant 0.000000e+00 : f32
    %329 = vector.shape_cast %328 : vector<1x128xi1> to vector<1x128xi1>
    %330 = vector.broadcast %329 : vector<1x128xi1> to vector<2x128xi1>
    %331 = vector.broadcast %cst_108 : f32 to vector<2x128xf32>
    %332 = arith.select %330, %323, %331 : vector<2x128xi1>, vector<2x128xf32>
    %c8_i32_109 = arith.constant 8 : i32
    %333 = vector.broadcast %c8_i32_109 : i32 to vector<1x128xi32>
    %334 = arith.cmpi sge, %2, %333 : vector<1x128xi32>
    %c8_i32_110 = arith.constant 8 : i32
    %335 = tpu.dynamic_rotate %332 by %c8_i32_110 dim 1 : vector<2x128xf32>, i32 -> vector<2x128xf32>
    %cst_111 = arith.constant 0.000000e+00 : f32
    %336 = vector.shape_cast %334 : vector<1x128xi1> to vector<1x128xi1>
    %337 = vector.broadcast %336 : vector<1x128xi1> to vector<2x128xi1>
    %338 = vector.broadcast %cst_111 : f32 to vector<2x128xf32>
    %339 = arith.select %337, %335, %338 : vector<2x128xi1>, vector<2x128xf32>
    %340 = arith.addf %332, %339 : vector<2x128xf32>
    %c16_i32_112 = arith.constant 16 : i32
    %341 = vector.broadcast %c16_i32_112 : i32 to vector<1x128xi32>
    %342 = arith.cmpi sge, %2, %341 : vector<1x128xi32>
    %c16_i32_113 = arith.constant 16 : i32
    %343 = tpu.dynamic_rotate %340 by %c16_i32_113 dim 1 : vector<2x128xf32>, i32 -> vector<2x128xf32>
    %cst_114 = arith.constant 0.000000e+00 : f32
    %344 = vector.shape_cast %342 : vector<1x128xi1> to vector<1x128xi1>
    %345 = vector.broadcast %344 : vector<1x128xi1> to vector<2x128xi1>
    %346 = vector.broadcast %cst_114 : f32 to vector<2x128xf32>
    %347 = arith.select %345, %343, %346 : vector<2x128xi1>, vector<2x128xf32>
    %348 = arith.addf %340, %347 : vector<2x128xf32>
    %c32_i32_115 = arith.constant 32 : i32
    %349 = vector.broadcast %c32_i32_115 : i32 to vector<1x128xi32>
    %350 = arith.cmpi sge, %2, %349 : vector<1x128xi32>
    %c32_i32_116 = arith.constant 32 : i32
    %351 = tpu.dynamic_rotate %348 by %c32_i32_116 dim 1 : vector<2x128xf32>, i32 -> vector<2x128xf32>
    %cst_117 = arith.constant 0.000000e+00 : f32
    %352 = vector.shape_cast %350 : vector<1x128xi1> to vector<1x128xi1>
    %353 = vector.broadcast %352 : vector<1x128xi1> to vector<2x128xi1>
    %354 = vector.broadcast %cst_117 : f32 to vector<2x128xf32>
    %355 = arith.select %353, %351, %354 : vector<2x128xi1>, vector<2x128xf32>
    %356 = arith.addf %348, %355 : vector<2x128xf32>
    %c64_i32_118 = arith.constant 64 : i32
    %357 = vector.broadcast %c64_i32_118 : i32 to vector<1x128xi32>
    %358 = arith.cmpi sge, %2, %357 : vector<1x128xi32>
    %c64_i32_119 = arith.constant 64 : i32
    %359 = tpu.dynamic_rotate %356 by %c64_i32_119 dim 1 : vector<2x128xf32>, i32 -> vector<2x128xf32>
    %cst_120 = arith.constant 0.000000e+00 : f32
    %360 = vector.shape_cast %358 : vector<1x128xi1> to vector<1x128xi1>
    %361 = vector.broadcast %360 : vector<1x128xi1> to vector<2x128xi1>
    %362 = vector.broadcast %cst_120 : f32 to vector<2x128xf32>
    %363 = arith.select %361, %359, %362 : vector<2x128xi1>, vector<2x128xf32>
    %364 = arith.addf %356, %363 : vector<2x128xf32>
    %c120_i32_121 = arith.constant 120 : i32
    %365 = vector.broadcast %c120_i32_121 : i32 to vector<1x128xi32>
    %366 = arith.cmpi sge, %2, %365 : vector<1x128xi32>
    %c128_i32_122 = arith.constant 128 : i32
    %367 = vector.broadcast %c128_i32_122 : i32 to vector<1x128xi32>
    %368 = arith.cmpi slt, %2, %367 : vector<1x128xi32>
    %369 = arith.andi %366, %368 : vector<1x128xi1>
    %cst_123 = arith.constant 0.000000e+00 : f32
    %370 = vector.shape_cast %369 : vector<1x128xi1> to vector<1x128xi1>
    %371 = vector.broadcast %370 : vector<1x128xi1> to vector<2x128xi1>
    %372 = vector.broadcast %cst_123 : f32 to vector<2x128xf32>
    %373 = arith.select %371, %323, %372 : vector<2x128xi1>, vector<2x128xf32>
    %c120_i32_124 = arith.constant 120 : i32
    %374 = vector.broadcast %c120_i32_124 : i32 to vector<1x128xi32>
    %375 = arith.cmpi slt, %2, %374 : vector<1x128xi32>
    %c120_i32_125 = arith.constant 120 : i32
    %376 = tpu.dynamic_rotate %373 by %c120_i32_125 dim 1 : vector<2x128xf32>, i32 -> vector<2x128xf32>
    %cst_126 = arith.constant 0.000000e+00 : f32
    %377 = vector.shape_cast %375 : vector<1x128xi1> to vector<1x128xi1>
    %378 = vector.broadcast %377 : vector<1x128xi1> to vector<2x128xi1>
    %379 = vector.broadcast %cst_126 : f32 to vector<2x128xf32>
    %380 = arith.select %378, %376, %379 : vector<2x128xi1>, vector<2x128xf32>
    %381 = arith.addf %373, %380 : vector<2x128xf32>
    %c112_i32_127 = arith.constant 112 : i32
    %382 = vector.broadcast %c112_i32_127 : i32 to vector<1x128xi32>
    %383 = arith.cmpi slt, %2, %382 : vector<1x128xi32>
    %c112_i32_128 = arith.constant 112 : i32
    %384 = tpu.dynamic_rotate %381 by %c112_i32_128 dim 1 : vector<2x128xf32>, i32 -> vector<2x128xf32>
    %cst_129 = arith.constant 0.000000e+00 : f32
    %385 = vector.shape_cast %383 : vector<1x128xi1> to vector<1x128xi1>
    %386 = vector.broadcast %385 : vector<1x128xi1> to vector<2x128xi1>
    %387 = vector.broadcast %cst_129 : f32 to vector<2x128xf32>
    %388 = arith.select %386, %384, %387 : vector<2x128xi1>, vector<2x128xf32>
    %389 = arith.addf %381, %388 : vector<2x128xf32>
    %c96_i32_130 = arith.constant 96 : i32
    %390 = vector.broadcast %c96_i32_130 : i32 to vector<1x128xi32>
    %391 = arith.cmpi slt, %2, %390 : vector<1x128xi32>
    %c96_i32_131 = arith.constant 96 : i32
    %392 = tpu.dynamic_rotate %389 by %c96_i32_131 dim 1 : vector<2x128xf32>, i32 -> vector<2x128xf32>
    %cst_132 = arith.constant 0.000000e+00 : f32
    %393 = vector.shape_cast %391 : vector<1x128xi1> to vector<1x128xi1>
    %394 = vector.broadcast %393 : vector<1x128xi1> to vector<2x128xi1>
    %395 = vector.broadcast %cst_132 : f32 to vector<2x128xf32>
    %396 = arith.select %394, %392, %395 : vector<2x128xi1>, vector<2x128xf32>
    %397 = arith.addf %389, %396 : vector<2x128xf32>
    %c64_i32_133 = arith.constant 64 : i32
    %398 = vector.broadcast %c64_i32_133 : i32 to vector<1x128xi32>
    %399 = arith.cmpi slt, %2, %398 : vector<1x128xi32>
    %c64_i32_134 = arith.constant 64 : i32
    %400 = tpu.dynamic_rotate %397 by %c64_i32_134 dim 1 : vector<2x128xf32>, i32 -> vector<2x128xf32>
    %cst_135 = arith.constant 0.000000e+00 : f32
    %401 = vector.shape_cast %399 : vector<1x128xi1> to vector<1x128xi1>
    %402 = vector.broadcast %401 : vector<1x128xi1> to vector<2x128xi1>
    %403 = vector.broadcast %cst_135 : f32 to vector<2x128xf32>
    %404 = arith.select %402, %400, %403 : vector<2x128xi1>, vector<2x128xf32>
    %405 = arith.addf %397, %404 : vector<2x128xf32>
    %406 = arith.subf %323, %364 : vector<2x128xf32>
    %c1_i32_136 = arith.constant 1 : i32
    %407 = vector.broadcast %c1_i32_136 : i32 to vector<1x128xi32>
    %408 = arith.cmpi sge, %1, %407 : vector<1x128xi32>
    %c8_i32_137 = arith.constant 8 : i32
    %409 = tpu.dynamic_rotate %406 by %c8_i32_137 dim 1 : vector<2x128xf32>, i32 -> vector<2x128xf32>
    %cst_138 = arith.constant 0.000000e+00 : f32
    %410 = vector.shape_cast %408 : vector<1x128xi1> to vector<1x128xi1>
    %411 = vector.broadcast %410 : vector<1x128xi1> to vector<2x128xi1>
    %412 = vector.broadcast %cst_138 : f32 to vector<2x128xf32>
    %413 = arith.select %411, %409, %412 : vector<2x128xi1>, vector<2x128xf32>
    %414 = arith.addf %406, %413 : vector<2x128xf32>
    %c2_i32_139 = arith.constant 2 : i32
    %415 = vector.broadcast %c2_i32_139 : i32 to vector<1x128xi32>
    %416 = arith.cmpi sge, %1, %415 : vector<1x128xi32>
    %c16_i32_140 = arith.constant 16 : i32
    %417 = tpu.dynamic_rotate %414 by %c16_i32_140 dim 1 : vector<2x128xf32>, i32 -> vector<2x128xf32>
    %cst_141 = arith.constant 0.000000e+00 : f32
    %418 = vector.shape_cast %416 : vector<1x128xi1> to vector<1x128xi1>
    %419 = vector.broadcast %418 : vector<1x128xi1> to vector<2x128xi1>
    %420 = vector.broadcast %cst_141 : f32 to vector<2x128xf32>
    %421 = arith.select %419, %417, %420 : vector<2x128xi1>, vector<2x128xf32>
    %422 = arith.addf %414, %421 : vector<2x128xf32>
    %c4_i32 = arith.constant 4 : i32
    %423 = vector.broadcast %c4_i32 : i32 to vector<1x128xi32>
    %424 = arith.cmpi sge, %1, %423 : vector<1x128xi32>
    %c32_i32_142 = arith.constant 32 : i32
    %425 = tpu.dynamic_rotate %422 by %c32_i32_142 dim 1 : vector<2x128xf32>, i32 -> vector<2x128xf32>
    %cst_143 = arith.constant 0.000000e+00 : f32
    %426 = vector.shape_cast %424 : vector<1x128xi1> to vector<1x128xi1>
    %427 = vector.broadcast %426 : vector<1x128xi1> to vector<2x128xi1>
    %428 = vector.broadcast %cst_143 : f32 to vector<2x128xf32>
    %429 = arith.select %427, %425, %428 : vector<2x128xi1>, vector<2x128xf32>
    %430 = arith.addf %422, %429 : vector<2x128xf32>
    %c8_i32_144 = arith.constant 8 : i32
    %431 = vector.broadcast %c8_i32_144 : i32 to vector<1x128xi32>
    %432 = arith.cmpi sge, %1, %431 : vector<1x128xi32>
    %c64_i32_145 = arith.constant 64 : i32
    %433 = tpu.dynamic_rotate %430 by %c64_i32_145 dim 1 : vector<2x128xf32>, i32 -> vector<2x128xf32>
    %cst_146 = arith.constant 0.000000e+00 : f32
    %434 = vector.shape_cast %432 : vector<1x128xi1> to vector<1x128xi1>
    %435 = vector.broadcast %434 : vector<1x128xi1> to vector<2x128xi1>
    %436 = vector.broadcast %cst_146 : f32 to vector<2x128xf32>
    %437 = arith.select %435, %433, %436 : vector<2x128xi1>, vector<2x128xf32>
    %438 = arith.addf %430, %437 : vector<2x128xf32>
    %c120_i32_147 = arith.constant 120 : i32
    %439 = vector.broadcast %c120_i32_147 : i32 to vector<1x128xi32>
    %440 = arith.cmpi sge, %2, %439 : vector<1x128xi32>
    %c128_i32_148 = arith.constant 128 : i32
    %441 = vector.broadcast %c128_i32_148 : i32 to vector<1x128xi32>
    %442 = arith.cmpi slt, %2, %441 : vector<1x128xi32>
    %443 = arith.andi %440, %442 : vector<1x128xi1>
    %cst_149 = arith.constant 0.000000e+00 : f32
    %444 = vector.shape_cast %443 : vector<1x128xi1> to vector<1x128xi1>
    %445 = vector.broadcast %444 : vector<1x128xi1> to vector<2x128xi1>
    %446 = vector.broadcast %cst_149 : f32 to vector<2x128xf32>
    %447 = arith.select %445, %438, %446 : vector<2x128xi1>, vector<2x128xf32>
    %c120_i32_150 = arith.constant 120 : i32
    %448 = vector.broadcast %c120_i32_150 : i32 to vector<1x128xi32>
    %449 = arith.cmpi slt, %2, %448 : vector<1x128xi32>
    %c120_i32_151 = arith.constant 120 : i32
    %450 = tpu.dynamic_rotate %447 by %c120_i32_151 dim 1 : vector<2x128xf32>, i32 -> vector<2x128xf32>
    %cst_152 = arith.constant 0.000000e+00 : f32
    %451 = vector.shape_cast %449 : vector<1x128xi1> to vector<1x128xi1>
    %452 = vector.broadcast %451 : vector<1x128xi1> to vector<2x128xi1>
    %453 = vector.broadcast %cst_152 : f32 to vector<2x128xf32>
    %454 = arith.select %452, %450, %453 : vector<2x128xi1>, vector<2x128xf32>
    %455 = arith.addf %447, %454 : vector<2x128xf32>
    %c112_i32_153 = arith.constant 112 : i32
    %456 = vector.broadcast %c112_i32_153 : i32 to vector<1x128xi32>
    %457 = arith.cmpi slt, %2, %456 : vector<1x128xi32>
    %c112_i32_154 = arith.constant 112 : i32
    %458 = tpu.dynamic_rotate %455 by %c112_i32_154 dim 1 : vector<2x128xf32>, i32 -> vector<2x128xf32>
    %cst_155 = arith.constant 0.000000e+00 : f32
    %459 = vector.shape_cast %457 : vector<1x128xi1> to vector<1x128xi1>
    %460 = vector.broadcast %459 : vector<1x128xi1> to vector<2x128xi1>
    %461 = vector.broadcast %cst_155 : f32 to vector<2x128xf32>
    %462 = arith.select %460, %458, %461 : vector<2x128xi1>, vector<2x128xf32>
    %463 = arith.addf %455, %462 : vector<2x128xf32>
    %c96_i32_156 = arith.constant 96 : i32
    %464 = vector.broadcast %c96_i32_156 : i32 to vector<1x128xi32>
    %465 = arith.cmpi slt, %2, %464 : vector<1x128xi32>
    %c96_i32_157 = arith.constant 96 : i32
    %466 = tpu.dynamic_rotate %463 by %c96_i32_157 dim 1 : vector<2x128xf32>, i32 -> vector<2x128xf32>
    %cst_158 = arith.constant 0.000000e+00 : f32
    %467 = vector.shape_cast %465 : vector<1x128xi1> to vector<1x128xi1>
    %468 = vector.broadcast %467 : vector<1x128xi1> to vector<2x128xi1>
    %469 = vector.broadcast %cst_158 : f32 to vector<2x128xf32>
    %470 = arith.select %468, %466, %469 : vector<2x128xi1>, vector<2x128xf32>
    %471 = arith.addf %463, %470 : vector<2x128xf32>
    %c64_i32_159 = arith.constant 64 : i32
    %472 = vector.broadcast %c64_i32_159 : i32 to vector<1x128xi32>
    %473 = arith.cmpi slt, %2, %472 : vector<1x128xi32>
    %c64_i32_160 = arith.constant 64 : i32
    %474 = tpu.dynamic_rotate %471 by %c64_i32_160 dim 1 : vector<2x128xf32>, i32 -> vector<2x128xf32>
    %cst_161 = arith.constant 0.000000e+00 : f32
    %475 = vector.shape_cast %473 : vector<1x128xi1> to vector<1x128xi1>
    %476 = vector.broadcast %475 : vector<1x128xi1> to vector<2x128xi1>
    %477 = vector.broadcast %cst_161 : f32 to vector<2x128xf32>
    %478 = arith.select %476, %474, %477 : vector<2x128xi1>, vector<2x128xf32>
    %479 = arith.addf %471, %478 : vector<2x128xf32>
    %c9_i32 = arith.constant 9 : i32
    %480 = vector.broadcast %c9_i32 : i32 to vector<1x128xi32>
    %481 = arith.cmpi sle, %1, %480 : vector<1x128xi32>
    %c80_i32 = arith.constant 80 : i32
    %482 = tpu.dynamic_rotate %438 by %c80_i32 dim 1 : vector<2x128xf32>, i32 -> vector<2x128xf32>
    %483 = vector.shape_cast %481 : vector<1x128xi1> to vector<1x128xi1>
    %484 = vector.broadcast %483 : vector<1x128xi1> to vector<2x128xi1>
    %485 = arith.select %484, %482, %479 : vector<2x128xi1>, vector<2x128xf32>
    %c6_i32 = arith.constant 6 : i32
    %486 = vector.broadcast %c6_i32 : i32 to vector<1x128xi32>
    %487 = arith.cmpi sge, %1, %486 : vector<1x128xi32>
    %c48_i32 = arith.constant 48 : i32
    %488 = tpu.dynamic_rotate %438 by %c48_i32 dim 1 : vector<2x128xf32>, i32 -> vector<2x128xf32>
    %cst_162 = arith.constant 0.000000e+00 : f32
    %489 = vector.shape_cast %487 : vector<1x128xi1> to vector<1x128xi1>
    %490 = vector.broadcast %489 : vector<1x128xi1> to vector<2x128xi1>
    %491 = vector.broadcast %cst_162 : f32 to vector<2x128xf32>
    %492 = arith.select %490, %488, %491 : vector<2x128xi1>, vector<2x128xf32>
    %493 = arith.subf %485, %492 : vector<2x128xf32>
    %c9_i32_163 = arith.constant 9 : i32
    %494 = vector.broadcast %c9_i32_163 : i32 to vector<1x128xi32>
    %495 = arith.subi %1, %494 : vector<1x128xi32>
    %c0_i32_164 = arith.constant 0 : i32
    %496 = vector.broadcast %c0_i32_164 : i32 to vector<1x128xi32>
    %497 = arith.maxsi %495, %496 : vector<1x128xi32>
    %498 = arith.sitofp %497 : vector<1x128xi32> to vector<1x128xf32>
    %499 = arith.subf %405, %364 : vector<2x128xf32>
    %500 = vector.broadcast %498 : vector<1x128xf32> to vector<2x128xf32>
    %501 = arith.mulf %500, %499 : vector<2x128xf32>
    %502 = arith.addf %493, %501 : vector<2x128xf32>
    %cst_165 = arith.constant 0.0833333358 : f32
    %503 = vector.broadcast %cst_165 : f32 to vector<2x128xf32>
    %504 = arith.mulf %502, %503 : vector<2x128xf32>
    %505 = arith.addf %504, %364 : vector<2x128xf32>
    %c0_166 = arith.constant 0 : index
    %c0_167 = arith.constant 0 : index
    %506 = vector.load %arg6[%c0_166, %c0_167] : memref<2x128xf32, #tpu.memory_space<vmem>>, vector<2x128xf32>
    tpu.vector_store %arg6[%c0_166, %c0_167], %505 {strides = array<i32>} : memref<2x128xf32, #tpu.memory_space<vmem>>, vector<2x128xf32>,
    %507 = arith.subf %323, %505 : vector<2x128xf32>
    %c0_168 = arith.constant 0 : index
    %c0_169 = arith.constant 0 : index
    %508 = vector.load %arg7[%c0_168, %c0_169] : memref<2x128xf32, #tpu.memory_space<vmem>>, vector<2x128xf32>
    tpu.vector_store %arg7[%c0_168, %c0_169], %507 {strides = array<i32>} : memref<2x128xf32, #tpu.memory_space<vmem>>, vector<2x128xf32>,
    return
  }
  func.func @transform_0(%arg0: i32) -> (i32, i32) {
    %c0_i32 = arith.constant 0 : i32
    %c0_i32_0 = arith.constant 0 : i32
    %c0_i32_1 = arith.constant 0 : i32
    return %c0_i32, %c0_i32_0 : i32, i32
  }
  func.func @transform_1(%arg0: i32) -> (i32, i32) {
    %c0_i32 = arith.constant 0 : i32
    %c0_i32_0 = arith.constant 0 : i32
    return %arg0, %c0_i32 : i32, i32
  }
  func.func @transform_2(%arg0: i32) -> (i32, i32) {
    %c0_i32 = arith.constant 0 : i32
    %c0_i32_0 = arith.constant 0 : i32
    return %arg0, %c0_i32 : i32, i32
  }
  func.func @transform_3(%arg0: i32) -> (i32, i32) {
    %c0_i32 = arith.constant 0 : i32
    %c0_i32_0 = arith.constant 0 : i32
    return %arg0, %c0_i32 : i32, i32
  }
  func.func @transform_4(%arg0: i32) -> (i32, i32) {
    %c0_i32 = arith.constant 0 : i32
    %c0_i32_0 = arith.constant 0 : i32
    return %arg0, %c0_i32 : i32, i32
  }
  func.func @transform_5(%arg0: i32) -> (i32, i32) {
    %c0_i32 = arith.constant 0 : i32
    %c0_i32_0 = arith.constant 0 : i32
    return %arg0, %c0_i32 : i32, i32
  }
  func.func @transform_6(%arg0: i32) -> (i32, i32) {
    %c0_i32 = arith.constant 0 : i32
    %c0_i32_0 = arith.constant 0 : i32
    return %arg0, %c0_i32 : i32, i32
  }
}

</mosaic_0001>

<llo_original>
// kernel: tpu_custom_call.1
$region0: #{tpu_custom_call.1}
  #allocation0 [shape = 'u32[]', space=smem, size = 0x4, offset = 0x4, fixed_abs, tag = 'smem constant byte address 0x4 - core index']
  #allocation1 [shape = 'u32[144,128]{1,0:T(1,128)}', space=vmem, size = 0x12000, scoped, tag = 'internal scratch']
  %s0 = inlined_call_operand.hbm [shape: s32[1,128], index: 0, kind: input, shape index: {}]
  %s1 = inlined_call_operand.vmem [shape: f32[2,128], index: 1, kind: input, shape index: {}]
  %s2 = inlined_call_operand.hbm [shape: f32[2,128], index: 2, kind: output, shape index: {0}]
  %s3 = inlined_call_operand.hbm [shape: f32[2,128], index: 3, kind: output, shape index: {1}]
  %s4 = inlined_call_operand.hbm [shape: f32[2,128], index: 4, kind: output, shape index: {2}]
  %s5 = inlined_call_operand.hbm [shape: f32[2,128], index: 5, kind: output, shape index: {3}]
  %s6 = inlined_call_operand.hbm [shape: f32[2,128], index: 6, kind: output, shape index: {4}]
  %7 = xla_tuple %s2, %s3, %s4, %s5, %s6
  %s8 = sld [smem:[#allocation0]]
  $region54: #{tpu_custom_call.1} parent=0
    _
  %s10 = ssub.s32 1, %s8
  %s11 = scalar_select 0, %s10, %s8
  $region1: #{tpu_custom_call.1} parent=0
    #allocation2 [shape = 'u8[512]{0}', space=vmem, size = 0x400, scoped, tag = 'input window, operand 0, single buffered']
    #allocation3 [shape = 's32[1]{0}', space=sflag, size = 0x4, scoped, tag = 'scoped memory for tpu_custom_call.1']
    #allocation4 [shape = 's32[1]{0}', space=sflag, size = 0x4, scoped, tag = 'scoped memory for tpu_custom_call.1']
    #allocation5 [shape = 'u8[1024]{0}', space=vmem, size = 0x400, scoped, tag = 'output window, operand 0, single buffered']
    #allocation6 [shape = 'u8[1024]{0}', space=vmem, size = 0x400, scoped, tag = 'output window, operand 1, single buffered']
    #allocation7 [shape = 's32[1]{0}', space=sflag, size = 0x4, scoped, tag = 'scoped memory for tpu_custom_call.1']
    #allocation8 [shape = 'u8[1024]{0}', space=vmem, size = 0x400, scoped, tag = 'output window, operand 2, single buffered']
    #allocation9 [shape = 'u8[1024]{0}', space=vmem, size = 0x400, scoped, tag = 'output window, operand 3, single buffered']
    #allocation10 [shape = 's32[1]{0}', space=sflag, size = 0x4, scoped, tag = 'scoped memory for tpu_custom_call.1']
    #allocation11 [shape = 'u8[1024]{0}', space=vmem, size = 0x400, scoped, tag = 'output window, operand 4, single buffered']
    %12 = vsyncpa [#allocation3], 0
    %13 = vsyncpa [#allocation4], 0
    %14 = vsyncpa [#allocation7], 0
    %15 = vsyncpa [#allocation10], 0
    // Predicated region
    $region2: #{tpu_custom_call.1} parent=1 // pred_check
      _
    $region3: #{tpu_custom_call.1} parent=1 // pred_check_branch
      %17 = sbr.rel (0) target = $region5
    $region4: #{tpu_custom_call.1} parent=1 // pred_region
      %s19 = ssub.s32 16, 16
      %20 = vsyncadd [#allocation3], %s19
      %s22 = sshll.u32 [#allocation2], 4
      %s23 = int_to_ptr.vmem [resolvable:$true] %s22
      %25 = dma.hbm_to_vmem [thread:$0]  %s0, 16, %s23, [#allocation3]
    $region5: #{tpu_custom_call.1} parent=1 // pred_fallthru
      _
    // Predicated region
    $region6: #{tpu_custom_call.1} parent=1 // pred_check
      _
    $region7: #{tpu_custom_call.1} parent=1 // pred_check_branch
      %27 = sbr.rel (0) target = $region9
    $region8: #{tpu_custom_call.1} parent=1 // pred_region
      _
    $region9: #{tpu_custom_call.1} parent=1 // pred_fallthru
      _
    // Predicated region
    $region10: #{tpu_custom_call.1} parent=1 // pred_check
      _
    $region11: #{tpu_custom_call.1} parent=1 // pred_check_branch
      %29 = sbr.rel (0) target = $region13
    $region12: #{tpu_custom_call.1} parent=1 // pred_region
      %30 = dma.done [#allocation3], 16
    $region13: #{tpu_custom_call.1} parent=1 // pred_fallthru
      _
    %v31 = vld [vmem:[%s1] sm:$0x3]
    %v32 = vld [vmem:[#allocation2] sm:$0x1]
    %v33 = vlaneseq
    %v34 = vand.u32 %v33, 127
    %vm35 = vcmp.ge.s32.totalorder %v34, 0
    %vm36 = vcmp.lt.s32.totalorder %v34, 8
    %vm37 = vmand %vm35, %vm36
    %v38 = vsel %vm37, 1, 0
    %vm39 = vcmp.eq.s32.totalorder %v38, 1
    %v40 = vsel %vm39, %v31, 0.0
    %vm41 = vcmp.ge.s32.totalorder %v34, 8
    %42 = vrot.lane.b32.xlu0 %v40, 8
    %v43 = vpop.permute.xlu0 %42
    %v44 = vsel %vm41, 1, 0
    %vm45 = vcmp.eq.s32.totalorder %v44, 1
    %v46 = vsel %vm45, %v43, 0.0
    %v47 = vadd.f32 %v40, %v46
    %vm48 = vcmp.ge.s32.totalorder %v34, 16
    %49 = vrot.lane.b32.xlu0 %v47, 16
    %v50 = vpop.permute.xlu0 %49
    %v51 = vsel %vm48, 1, 0
    %vm52 = vcmp.eq.s32.totalorder %v51, 1
    %v53 = vsel %vm52, %v50, 0.0
    %v54 = vadd.f32 %v47, %v53
    %vm55 = vcmp.ge.s32.totalorder %v34, 32
    %56 = vrot.lane.b32.xlu0 %v54, 32
    %v57 = vpop.permute.xlu0 %56
    %v58 = vsel %vm55, 1, 0
    %vm59 = vcmp.eq.s32.totalorder %v58, 1
    %v60 = vsel %vm59, %v57, 0.0
    %v61 = vadd.f32 %v54, %v60
    %vm62 = vcmp.ge.s32.totalorder %v34, 64
    %63 = vrot.lane.b32.xlu0 %v61, 64
    %v64 = vpop.permute.xlu0 %63
    %v65 = vsel %vm62, 1, 0
    %vm66 = vcmp.eq.s32.totalorder %v65, 1
    %v67 = vsel %vm66, %v64, 0.0
    %v68 = vadd.f32 %v61, %v67
    %vm69 = vcmp.ge.s32.totalorder %v34, 120
    %vm70 = vcmp.lt.s32.totalorder %v34, 128
    %vm71 = vmand %vm69, %vm70
    %v72 = vsel %vm71, 1, 0
    %vm73 = vcmp.eq.s32.totalorder %v72, 1
    %v74 = vsel %vm73, %v31, 0.0
    %vm75 = vcmp.lt.s32.totalorder %v34, 120
    %76 = vrot.lane.b32.xlu0 %v74, 120
    %v77 = vpop.permute.xlu0 %76
    %v78 = vsel %vm75, 1, 0
    %vm79 = vcmp.eq.s32.totalorder %v78, 1
    %v80 = vsel %vm79, %v77, 0.0
    %v81 = vadd.f32 %v74, %v80
    %vm82 = vcmp.lt.s32.totalorder %v34, 112
    %83 = vrot.lane.b32.xlu0 %v81, 112
    %v84 = vpop.permute.xlu0 %83
    %v85 = vsel %vm82, 1, 0
    %vm86 = vcmp.eq.s32.totalorder %v85, 1
    %v87 = vsel %vm86, %v84, 0.0
    %v88 = vadd.f32 %v81, %v87
    %vm89 = vcmp.lt.s32.totalorder %v34, 96
    %90 = vrot.lane.b32.xlu0 %v88, 96
    %v91 = vpop.permute.xlu0 %90
    %v92 = vsel %vm89, 1, 0
    %vm93 = vcmp.eq.s32.totalorder %v92, 1
    %v94 = vsel %vm93, %v91, 0.0
    %v95 = vadd.f32 %v88, %v94
    %vm96 = vcmp.lt.s32.totalorder %v34, 64
    %97 = vrot.lane.b32.xlu0 %v95, 64
    %v98 = vpop.permute.xlu0 %97
    %v99 = vsel %vm96, 1, 0
    %vm100 = vcmp.eq.s32.totalorder %v99, 1
    %v101 = vsel %vm100, %v98, 0.0
    %v102 = vadd.f32 %v95, %v101
    %103 = vrot.lane.b32.xlu0 %v31, 8
    %v104 = vpop.permute.xlu0 %103
    %vm105 = vcmp.ge.s32.totalorder %v32, 1
    %v106 = vsel %vm105, 1, 0
    %v107 = vlaneseq
    %v108 = vshrl.u32 %v107, 7
    %v109 = vsub.s32 0, %v108
    %v110 = vrot.slane %v106, %v109
    %vm111 = vcmp.eq.s32.totalorder %v110, 1
    %v112 = vsel %vm111, %v104, %v68
    %v113 = vadd.f32 %v31, %v112
    %114 = vrot.lane.b32.xlu0 %v31, 120
    %v115 = vpop.permute.xlu0 %114
    %vm116 = vcmp.le.s32.totalorder %v32, 14
    %v117 = vsel %vm116, 1, 0
    %v118 = vlaneseq
    %v119 = vshrl.u32 %v118, 7
    %v120 = vsub.s32 0, %v119
    %v121 = vrot.slane %v117, %v120
    %vm122 = vcmp.eq.s32.totalorder %v121, 1
    %v123 = vsel %vm122, %v115, %v102
    %v124 = vadd.f32 %v113, %v123
    %v125 = vmul.f32 %v124, 0.33333334
    %126 = vst [vmem:[#allocation5] sm:$0x3] %v125
    %v127 = vsub.f32 %v31, %v125
    %v128 = vsel %vm39, %v127, 0.0
    %129 = vrot.lane.b32.xlu0 %v128, 8
    %v130 = vpop.permute.xlu0 %129
    %v131 = vsel %vm45, %v130, 0.0
    %v132 = vadd.f32 %v128, %v131
    %133 = vrot.lane.b32.xlu0 %v132, 16
    %v134 = vpop.permute.xlu0 %133
    %v135 = vsel %vm52, %v134, 0.0
    %v136 = vadd.f32 %v132, %v135
    %137 = vrot.lane.b32.xlu0 %v136, 32
    %v138 = vpop.permute.xlu0 %137
    %v139 = vsel %vm59, %v138, 0.0
    %v140 = vadd.f32 %v136, %v139
    %141 = vrot.lane.b32.xlu0 %v140, 64
    %v142 = vpop.permute.xlu0 %141
    %v143 = vsel %vm66, %v142, 0.0
    %v144 = vadd.f32 %v140, %v143
    %v145 = vsel %vm73, %v127, 0.0
    %146 = vrot.lane.b32.xlu0 %v145, 120
    %v147 = vpop.permute.xlu0 %146
    %v148 = vsel %vm79, %v147, 0.0
    %v149 = vadd.f32 %v145, %v148
    %150 = vrot.lane.b32.xlu0 %v149, 112
    %v151 = vpop.permute.xlu0 %150
    %v152 = vsel %vm86, %v151, 0.0
    %v153 = vadd.f32 %v149, %v152
    %154 = vrot.lane.b32.xlu0 %v153, 96
    %v155 = vpop.permute.xlu0 %154
    %v156 = vsel %vm93, %v155, 0.0
    %v157 = vadd.f32 %v153, %v156
    %158 = vrot.lane.b32.xlu0 %v157, 64
    %v159 = vpop.permute.xlu0 %158
    %v160 = vsel %vm100, %v159, 0.0
    %v161 = vadd.f32 %v157, %v160
    %162 = vrot.lane.b32.xlu0 %v127, 8
    %v163 = vpop.permute.xlu0 %162
    %v164 = vsel %vm111, %v163, %v144
    %v165 = vadd.f32 %v127, %v164
    %166 = vrot.lane.b32.xlu0 %v127, 120
    %v167 = vpop.permute.xlu0 %166
    %v168 = vsel %vm122, %v167, %v161
    %v169 = vadd.f32 %v165, %v168
    %170 = vrot.lane.b32.xlu0 %v127, 112
    %v171 = vpop.permute.xlu0 %170
    %vm172 = vcmp.le.s32.totalorder %v32, 13
    %v173 = vsel %vm172, 1, 0
    %v174 = vlaneseq
    %v175 = vshrl.u32 %v174, 7
    %v176 = vsub.s32 0, %v175
    %v177 = vrot.slane %v173, %v176
    %vm178 = vcmp.eq.s32.totalorder %v177, 1
    %v179 = vsel %vm178, %v171, %v161
    %v180 = vadd.f32 %v169, %v179
    %v181 = vmul.f32 %v180, 0.25
    %182 = vst [vmem:[#allocation6] sm:$0x3] %v181
    %v183 = vsub.f32 %v127, %v181
    %v184 = vsel %vm39, %v183, 0.0
    %185 = vrot.lane.b32.xlu0 %v184, 8
    %v186 = vpop.permute.xlu0 %185
    %v187 = vsel %vm45, %v186, 0.0
    %v188 = vadd.f32 %v184, %v187
    %189 = vrot.lane.b32.xlu0 %v188, 16
    %v190 = vpop.permute.xlu0 %189
    %v191 = vsel %vm52, %v190, 0.0
    %v192 = vadd.f32 %v188, %v191
    %193 = vrot.lane.b32.xlu0 %v192, 32
    %v194 = vpop.permute.xlu0 %193
    %v195 = vsel %vm59, %v194, 0.0
    %v196 = vadd.f32 %v192, %v195
    %197 = vrot.lane.b32.xlu0 %v196, 64
    %v198 = vpop.permute.xlu0 %197
    %v199 = vsel %vm66, %v198, 0.0
    %v200 = vadd.f32 %v196, %v199
    %v201 = vsel %vm73, %v183, 0.0
    %202 = vrot.lane.b32.xlu0 %v201, 120
    %v203 = vpop.permute.xlu0 %202
    %v204 = vsel %vm79, %v203, 0.0
    %v205 = vadd.f32 %v201, %v204
    %206 = vrot.lane.b32.xlu0 %v205, 112
    %v207 = vpop.permute.xlu0 %206
    %v208 = vsel %vm86, %v207, 0.0
    %v209 = vadd.f32 %v205, %v208
    %210 = vrot.lane.b32.xlu0 %v209, 96
    %v211 = vpop.permute.xlu0 %210
    %v212 = vsel %vm93, %v211, 0.0
    %v213 = vadd.f32 %v209, %v212
    %214 = vrot.lane.b32.xlu0 %v213, 64
    %v215 = vpop.permute.xlu0 %214
    %v216 = vsel %vm100, %v215, 0.0
    %v217 = vadd.f32 %v213, %v216
    %218 = vrot.lane.b32.xlu0 %v183, 16
    %v219 = vpop.permute.xlu0 %218
    %vm220 = vcmp.ge.s32.totalorder %v32, 2
    %v221 = vsel %vm220, 1, 0
    %v222 = vlaneseq
    %v223 = vshrl.u32 %v222, 7
    %v224 = vsub.s32 0, %v223
    %v225 = vrot.slane %v221, %v224
    %vm226 = vcmp.eq.s32.totalorder %v225, 1
    %v227 = vsel %vm226, %v219, %v200
    %v228 = vadd.f32 %v183, %v227
    %229 = vrot.lane.b32.xlu0 %v183, 8
    %v230 = vpop.permute.xlu0 %229
    %v231 = vsel %vm111, %v230, %v200
    %v232 = vadd.f32 %v228, %v231
    %233 = vrot.lane.b32.xlu0 %v183, 120
    %v234 = vpop.permute.xlu0 %233
    %v235 = vsel %vm122, %v234, %v217
    %v236 = vadd.f32 %v232, %v235
    %237 = vrot.lane.b32.xlu0 %v183, 112
    %v238 = vpop.permute.xlu0 %237
    %v239 = vsel %vm178, %v238, %v217
    %v240 = vadd.f32 %v236, %v239
    %v241 = vmul.f32 %v240, 0.2
    %242 = vst [vmem:[#allocation8] sm:$0x3] %v241
    %v243 = vsub.f32 %v183, %v241
    %v244 = vsel %vm39, %v243, 0.0
    %245 = vrot.lane.b32.xlu0 %v244, 8
    %v246 = vpop.permute.xlu0 %245
    %v247 = vsel %vm45, %v246, 0.0
    %v248 = vadd.f32 %v244, %v247
    %249 = vrot.lane.b32.xlu0 %v248, 16
    %v250 = vpop.permute.xlu0 %249
    %v251 = vsel %vm52, %v250, 0.0
    %v252 = vadd.f32 %v248, %v251
    %253 = vrot.lane.b32.xlu0 %v252, 32
    %v254 = vpop.permute.xlu0 %253
    %v255 = vsel %vm59, %v254, 0.0
    %v256 = vadd.f32 %v252, %v255
    %257 = vrot.lane.b32.xlu0 %v256, 64
    %v258 = vpop.permute.xlu0 %257
    %v259 = vsel %vm66, %v258, 0.0
    %v260 = vadd.f32 %v256, %v259
    %v261 = vsel %vm73, %v243, 0.0
    %262 = vrot.lane.b32.xlu0 %v261, 120
    %v263 = vpop.permute.xlu0 %262
    %v264 = vsel %vm79, %v263, 0.0
    %v265 = vadd.f32 %v261, %v264
    %266 = vrot.lane.b32.xlu0 %v265, 112
    %v267 = vpop.permute.xlu0 %266
    %v268 = vsel %vm86, %v267, 0.0
    %v269 = vadd.f32 %v265, %v268
    %270 = vrot.lane.b32.xlu0 %v269, 96
    %v271 = vpop.permute.xlu0 %270
    %v272 = vsel %vm93, %v271, 0.0
    %v273 = vadd.f32 %v269, %v272
    %274 = vrot.lane.b32.xlu0 %v273, 64
    %v275 = vpop.permute.xlu0 %274
    %v276 = vsel %vm100, %v275, 0.0
    %v277 = vadd.f32 %v273, %v276
    %v278 = vsub.f32 %v243, %v260
    %279 = vrot.lane.b32.xlu0 %v278, 8
    %v280 = vpop.permute.xlu0 %279
    %v281 = vsel %vm111, %v280, 0.0
    %v282 = vadd.f32 %v278, %v281
    %283 = vrot.lane.b32.xlu0 %v282, 16
    %v284 = vpop.permute.xlu0 %283
    %v285 = vsel %vm226, %v284, 0.0
    %v286 = vadd.f32 %v282, %v285
    %vm287 = vcmp.ge.s32.totalorder %v32, 4
    %288 = vrot.lane.b32.xlu0 %v286, 32
    %v289 = vpop.permute.xlu0 %288
    %v290 = vsel %vm287, 1, 0
    %v291 = vlaneseq
    %v292 = vshrl.u32 %v291, 7
    %v293 = vsub.s32 0, %v292
    %v294 = vrot.slane %v290, %v293
    %vm295 = vcmp.eq.s32.totalorder %v294, 1
    %v296 = vsel %vm295, %v289, 0.0
    %v297 = vadd.f32 %v286, %v296
    %vm298 = vcmp.ge.s32.totalorder %v32, 8
    %299 = vrot.lane.b32.xlu0 %v297, 64
    %v300 = vpop.permute.xlu0 %299
    %v301 = vsel %vm298, 1, 0
    %v302 = vlaneseq
    %v303 = vshrl.u32 %v302, 7
    %v304 = vsub.s32 0, %v303
    %v305 = vrot.slane %v301, %v304
    %vm306 = vcmp.eq.s32.totalorder %v305, 1
    %v307 = vsel %vm306, %v300, 0.0
    %v308 = vadd.f32 %v297, %v307
    %v309 = vsel %vm73, %v308, 0.0
    %310 = vrot.lane.b32.xlu0 %v309, 120
    %v311 = vpop.permute.xlu0 %310
    %v312 = vsel %vm79, %v311, 0.0
    %v313 = vadd.f32 %v309, %v312
    %314 = vrot.lane.b32.xlu0 %v313, 112
    %v315 = vpop.permute.xlu0 %314
    %v316 = vsel %vm86, %v315, 0.0
    %v317 = vadd.f32 %v313, %v316
    %318 = vrot.lane.b32.xlu0 %v317, 96
    %v319 = vpop.permute.xlu0 %318
    %v320 = vsel %vm93, %v319, 0.0
    %v321 = vadd.f32 %v317, %v320
    %322 = vrot.lane.b32.xlu0 %v321, 64
    %v323 = vpop.permute.xlu0 %322
    %v324 = vsel %vm100, %v323, 0.0
    %v325 = vadd.f32 %v321, %v324
    %vm326 = vcmp.le.s32.totalorder %v32, 9
    %327 = vrot.lane.b32.xlu0 %v308, 80
    %v328 = vpop.permute.xlu0 %327
    %v329 = vsel %vm326, 1, 0
    %v330 = vlaneseq
    %v331 = vshrl.u32 %v330, 7
    %v332 = vsub.s32 0, %v331
    %v333 = vrot.slane %v329, %v332
    %vm334 = vcmp.eq.s32.totalorder %v333, 1
    %v335 = vsel %vm334, %v328, %v325
    %vm336 = vcmp.ge.s32.totalorder %v32, 6
    %337 = vrot.lane.b32.xlu0 %v308, 48
    %v338 = vpop.permute.xlu0 %337
    %v339 = vsel %vm336, 1, 0
    %v340 = vlaneseq
    %v341 = vshrl.u32 %v340, 7
    %v342 = vsub.s32 0, %v341
    %v343 = vrot.slane %v339, %v342
    %vm344 = vcmp.eq.s32.totalorder %v343, 1
    %v345 = vsel %vm344, %v338, 0.0
    %v346 = vsub.f32 %v335, %v345
    %v347 = vsub.s32 %v32, 9
    %vm348 = vcmp.gt.s32.totalorder %v347, 0
    %v349 = vsel %vm348, %v347, 0
    %v350 = vcvt.s32.f32 %v349
    %v351 = vsub.f32 %v277, %v260
    %v353 = vlaneseq
    %v354 = vshrl.u32 %v353, 7
    %v355 = vsub.s32 0, %v354
    %v356 = vrot.slane %v350, %v355
    %v358 = vmul.f32 %v356, %v351
    %v359 = vadd.f32 %v346, %v358
    %v360 = vmul.f32 %v359, 0.083333336
    %v361 = vadd.f32 %v360, %v260
    %362 = vst [vmem:[#allocation9] sm:$0x3] %v361
    %v363 = vsub.f32 %v243, %v361
    %364 = vst [vmem:[#allocation11] sm:$0x3] %v363
    // Predicated region
    $region14: #{tpu_custom_call.1} parent=1 // pred_check
      _
    $region15: #{tpu_custom_call.1} parent=1 // pred_check_branch
      %366 = sbr.rel (0) target = $region17
    $region16: #{tpu_custom_call.1} parent=1 // pred_region
      %s368 = ssub.s32 32, 32
      %369 = vsyncadd [#allocation4], %s368
      %s371 = sshll.u32 [#allocation5], 4
      %s372 = int_to_ptr.vmem [resolvable:$true] %s371
      %374 = dma.vmem_to_hbm [thread:$0]  %s372, 32, %s2, [#allocation4]
    $region17: #{tpu_custom_call.1} parent=1 // pred_fallthru
      _
    // Predicated region
    $region18: #{tpu_custom_call.1} parent=1 // pred_check
      _
    $region19: #{tpu_custom_call.1} parent=1 // pred_check_branch
      %376 = sbr.rel (0) target = $region21
    $region20: #{tpu_custom_call.1} parent=1 // pred_region
      %s378 = ssub.s32 32, 32
      %379 = vsyncadd [#allocation7], %s378
      %s381 = sshll.u32 [#allocation6], 4
      %s382 = int_to_ptr.vmem [resolvable:$true] %s381
      %384 = dma.vmem_to_hbm [thread:$0]  %s382, 32, %s3, [#allocation7]
    $region21: #{tpu_custom_call.1} parent=1 // pred_fallthru
      _
    // Predicated region
    $region22: #{tpu_custom_call.1} parent=1 // pred_check
      _
    $region23: #{tpu_custom_call.1} parent=1 // pred_check_branch
      %386 = sbr.rel (0) target = $region25
    $region24: #{tpu_custom_call.1} parent=1 // pred_region
      %s388 = ssub.s32 32, 32
      %389 = vsyncadd [#allocation7], %s388
      %s391 = sshll.u32 [#allocation8], 4
      %s392 = int_to_ptr.vmem [resolvable:$true] %s391
      %394 = dma.vmem_to_hbm [thread:$0]  %s392, 32, %s4, [#allocation7]
    $region25: #{tpu_custom_call.1} parent=1 // pred_fallthru
      _
    // Predicated region
    $region26: #{tpu_custom_call.1} parent=1 // pred_check
      _
    $region27: #{tpu_custom_call.1} parent=1 // pred_check_branch
      %396 = sbr.rel (0) target = $region29
    $region28: #{tpu_custom_call.1} parent=1 // pred_region
      %s398 = ssub.s32 32, 32
      %399 = vsyncadd [#allocation10], %s398
      %s401 = sshll.u32 [#allocation9], 4
      %s402 = int_to_ptr.vmem [resolvable:$true] %s401
      %404 = dma.vmem_to_hbm [thread:$0]  %s402, 32, %s5, [#allocation10]
    $region29: #{tpu_custom_call.1} parent=1 // pred_fallthru
      _
    // Predicated region
    $region30: #{tpu_custom_call.1} parent=1 // pred_check
      _
    $region31: #{tpu_custom_call.1} parent=1 // pred_check_branch
      %406 = sbr.rel (0) target = $region33
    $region32: #{tpu_custom_call.1} parent=1 // pred_region
      %s408 = ssub.s32 32, 32
      %409 = vsyncadd [#allocation10], %s408
      %s411 = sshll.u32 [#allocation11], 4
      %s412 = int_to_ptr.vmem [resolvable:$true] %s411
      %414 = dma.vmem_to_hbm [thread:$0]  %s412, 32, %s6, [#allocation10]
    $region33: #{tpu_custom_call.1} parent=1 // pred_fallthru
      _
    // Predicated region
    $region34: #{tpu_custom_call.1} parent=1 // pred_check
      _
    $region35: #{tpu_custom_call.1} parent=1 // pred_check_branch
      %416 = sbr.rel (0) target = $region37
    $region36: #{tpu_custom_call.1} parent=1 // pred_region
      %417 = dma.done [#allocation4], 32
    $region37: #{tpu_custom_call.1} parent=1 // pred_fallthru
      _
    // Predicated region
    $region38: #{tpu_custom_call.1} parent=1 // pred_check
      _
    $region39: #{tpu_custom_call.1} parent=1 // pred_check_branch
      %419 = sbr.rel (0) target = $region41
    $region40: #{tpu_custom_call.1} parent=1 // pred_region
      %420 = dma.done [#allocation7], 32
    $region41: #{tpu_custom_call.1} parent=1 // pred_fallthru
      _
    // Predicated region
    $region42: #{tpu_custom_call.1} parent=1 // pred_check
      _
    $region43: #{tpu_custom_call.1} parent=1 // pred_check_branch
      %422 = sbr.rel (0) target = $region45
    $region44: #{tpu_custom_call.1} parent=1 // pred_region
      %423 = dma.done [#allocation7], 32
    $region45: #{tpu_custom_call.1} parent=1 // pred_fallthru
      _
    // Predicated region
    $region46: #{tpu_custom_call.1} parent=1 // pred_check
      _
    $region47: #{tpu_custom_call.1} parent=1 // pred_check_branch
      %425 = sbr.rel (0) target = $region49
    $region48: #{tpu_custom_call.1} parent=1 // pred_region
      %426 = dma.done [#allocation10], 32
    $region49: #{tpu_custom_call.1} parent=1 // pred_fallthru
      _
    // Predicated region
    $region50: #{tpu_custom_call.1} parent=1 // pred_check
      _
    $region51: #{tpu_custom_call.1} parent=1 // pred_check_branch
      %428 = sbr.rel (0) target = $region53
    $region52: #{tpu_custom_call.1} parent=1 // pred_region
      %429 = dma.done [#allocation10], 32
    $region53: #{tpu_custom_call.1} parent=1 // pred_fallthru
      _
    %430 = vsyncpa [#allocation3], 1
    %431 = vsyncpa [#allocation4], 1
    %432 = vsyncpa [#allocation7], 1
    %433 = vsyncpa [#allocation10], 1

</llo_original>
